<compile_context>
chip_gen: v7x
topology: tpu7x:2x2x1
jax: 0.10.0
libtpu: 0.0.40
codegen_flags: <defaults>
</compile_context>

<pallas_src>
import functools

import jax
import jax.numpy as jnp
from jax.experimental import pallas as pl
from jax.experimental.pallas import tpu as pltpu

MATMUL_DTYPE = jnp.float32   # set to jnp.bfloat16 on v6e/v7x after re-validation


# ----------------------------------------------------------------------------
# In-kernel helpers
# ----------------------------------------------------------------------------
def _dot(a, b):
    return jnp.dot(a.astype(MATMUL_DTYPE), b.astype(MATMUL_DTYPE),
                   preferred_element_type=jnp.float32)


def _dilated3(x, w_flat, b, d, t_idx):
    """Conv1d(kernel=3, dilation=d, padding=d) as ONE matmul.

    x: (F, T); w_flat: (Cout, 3F) with column blocks [tap(t-d), tap(t), tap(t+d)];
    b: (Cout, 1); t_idx: (1, T) int32 iota (hoisted, built once per kernel).
    """
    F_, T = x.shape
    # x[t-d] (zero for t < d) and x[t+d] (zero for t >= T-d) via roll + lane mask
    xm = jnp.where(t_idx >= d, pltpu.roll(x, shift=d, axis=1), 0.0)
    xp = jnp.where(t_idx < T - d, pltpu.roll(x, shift=T - d, axis=1), 0.0)
    xcat = jnp.concatenate([xm, x, xp], axis=0)          # (3F, T), deeper-K MXU feed
    return _dot(w_flat, xcat) + b


# ----------------------------------------------------------------------------
# Fused stage kernels (one batch element per program)
# ----------------------------------------------------------------------------
def _pg_stage_kernel(x_ref, win_ref, bin_ref, wd1_ref, bd1_ref, wd2_ref, bd2_ref,
                     wf_ref, bf_ref, wo1_ref, bo1_ref, wo3_ref, bo3_ref,
                     o1_ref, o3_ref, *, dils1, dils2):
    """conv_1x1_in -> L_PG x (dual dilated conv + fusion + relu + residual)
    -> both conv_out heads (conv_out_1 and conv_out_3)."""
    T = x_ref.shape[-1]
    t_idx = jax.lax.broadcasted_iota(jnp.int32, (1, T), 1)   # hoisted, reused by all layers
    f = _dot(win_ref[...], x_ref[...]) + bin_ref[...]         # (F, T)
    for i, (d1, d2) in enumerate(zip(dils1, dils2)):
        c1 = _dilated3(f, wd1_ref[i], bd1_ref[i], d1, t_idx)
        c2 = _dilated3(f, wd2_ref[i], bd2_ref[i], d2, t_idx)
        c = jnp.concatenate([c1, c2], axis=0)                 # (2F, T)
        fused = _dot(wf_ref[i], c) + bf_ref[i]                # single (F,2F)@(2F,T)
        f = jnp.maximum(fused, 0.0) + f                       # relu, dropout(identity), residual
    o1_ref[...] = _dot(wo1_ref[...], f) + bo1_ref[...]
    o3_ref[...] = _dot(wo3_ref[...], f) + bo3_ref[...]


def _refine_chain_kernel(x_ref, w1_ref, b1_ref, wd_ref, bd_ref, wp_ref, bp_ref,
                         wo_ref, bo_ref, o_ref, *, num_R, L_R):
    """num_R refinement stages chained: softmax -> 1x1 -> L_R DRLs -> conv_out."""
    T = x_ref.shape[-1]
    t_idx = jax.lax.broadcasted_iota(jnp.int32, (1, T), 1)
    cur = x_ref[...]                                          # (Cin, T)
    for s in range(num_R):
        y = jax.nn.softmax(cur, axis=0)                       # softmax over channels
        h = _dot(w1_ref[s], y) + b1_ref[s]                    # (F, T)
        for i in range(L_R):
            z = jnp.maximum(_dilated3(h, wd_ref[s, i], bd_ref[s, i], 2 ** i, t_idx), 0.0)
            z = _dot(wp_ref[s, i], z) + bp_ref[s, i]
            h = h + z                                         # residual
        cur = _dot(wo_ref[s], h) + bo_ref[s]                  # (Cout, T)
        o_ref[s, 0] = cur


# ----------------------------------------------------------------------------
# pallas_call wrappers
# ----------------------------------------------------------------------------
def _full_spec(a):
    nd = a.ndim
    return pl.BlockSpec(a.shape, lambda n, _nd=nd: (0,) * _nd)


def _flatten_k3(w):
    """(3, Cout, Cin) -> (Cout, 3*Cin), taps ordered [t-d, t, t+d]."""
    k, co, ci = w.shape
    return jnp.transpose(w, (1, 0, 2)).reshape(co, k * ci)


def pg_all_streams(x1, x2, x3, pg, L_PG):
    """Fused PG trunk for ALL THREE input streams in one pallas_call.

    Returns (out_1, out_2, out_3) with out_1/out_2 from conv_out_1 and out_3
    from conv_out_3, exactly as the PyTorch Prediction_Generation.forward.
    """
    N, dim, T = x1.shape
    x_all = jnp.concatenate([x1, x2, x3], axis=0)             # (3N, dim, T)
    dils1 = tuple(2 ** (L_PG - 1 - i) for i in range(L_PG))
    dils2 = tuple(2 ** i for i in range(L_PG))
    # Stack per-layer weights with a leading layer dim (tiny; lives in VMEM).
    wd1 = jnp.stack([_flatten_k3(pg["dil1"][i][0]) for i in range(L_PG)])   # (L, F, 3F)
    bd1 = jnp.stack([pg["dil1"][i][1] for i in range(L_PG)])                # (L, F, 1)
    wd2 = jnp.stack([_flatten_k3(pg["dil2"][i][0]) for i in range(L_PG)])
    bd2 = jnp.stack([pg["dil2"][i][1] for i in range(L_PG)])
    wf = jnp.stack([pg["fusion"][i][0] for i in range(L_PG)])               # (L, F, 2F)
    bf = jnp.stack([pg["fusion"][i][1] for i in range(L_PG)])
    w_in, b_in = pg["conv_1x1_in"]
    wo1, bo1 = pg["conv_out_1"]
    wo3, bo3 = pg["conv_out_3"]
    C1, C3 = wo1.shape[0], wo3.shape[0]

    params = [w_in, b_in, wd1, bd1, wd2, bd2, wf, bf, wo1, bo1, wo3, bo3]
    kern = functools.partial(_pg_stage_kernel, dils1=dils1, dils2=dils2)
    in_specs = [pl.BlockSpec((None, dim, T), lambda n: (n, 0, 0))]
    in_specs += [_full_spec(p) for p in params]
    out1_all, out3_all = pl.pallas_call(
        kern,
        grid=(3 * N,),
        in_specs=in_specs,
        out_specs=[pl.BlockSpec((None, C1, T), lambda n: (n, 0, 0)),
                   pl.BlockSpec((None, C3, T), lambda n: (n, 0, 0))],
        out_shape=(jax.ShapeDtypeStruct((3 * N, C1, T), jnp.float32),
                   jax.ShapeDtypeStruct((3 * N, C3, T), jnp.float32)),
        compiler_params=pltpu.CompilerParams(dimension_semantics=("parallel",)),
    )(x_all, *params)
    return out1_all[:N], out1_all[N:2 * N], out3_all[2 * N:]


def refine_chain(x, Rs, L_R):
    """All num_R refinement stages of one branch fused into a single kernel.

    x: (N, Cin, T) -> returns (num_R, N, Cout, T) stacked per-stage outputs
    (written directly in that layout by the out BlockSpec; no post-transpose).
    """
    num_R = len(Rs)
    N, Cin, T = x.shape
    Cout = Rs[0]["conv_out"][0].shape[0]

    w1 = jnp.stack([R["conv_1x1"][0] for R in Rs])                            # (S, F, Cin)
    b1 = jnp.stack([R["conv_1x1"][1] for R in Rs])                            # (S, F, 1)
    wd = jnp.stack([jnp.stack([_flatten_k3(R["layers"][i][0]) for i in range(L_R)])
                    for R in Rs])                                             # (S, L, F, 3F)
    bd = jnp.stack([jnp.stack([R["layers"][i][1] for i in range(L_R)]) for R in Rs])
    wp = jnp.stack([jnp.stack([R["layers"][i][2] for i in range(L_R)]) for R in Rs])
    bp = jnp.stack([jnp.stack([R["layers"][i][3] for i in range(L_R)]) for R in Rs])
    wo = jnp.stack([R["conv_out"][0] for R in Rs])                            # (S, Cout, F)
    bo = jnp.stack([R["conv_out"][1] for R in Rs])

    params = [w1, b1, wd, bd, wp, bp, wo, bo]
    kern = functools.partial(_refine_chain_kernel, num_R=num_R, L_R=L_R)
    in_specs = [pl.BlockSpec((None, Cin, T), lambda n: (n, 0, 0))]
    in_specs += [_full_spec(p) for p in params]
    return pl.pallas_call(
        kern,
        grid=(N,),
        in_specs=in_specs,
        out_specs=pl.BlockSpec((num_R, 1, Cout, T), lambda n: (0, n, 0, 0)),
        out_shape=jax.ShapeDtypeStruct((num_R, N, Cout, T), jnp.float32),
        compiler_params=pltpu.CompilerParams(dimension_semantics=("parallel",)),
    )(x, *params)


# ----------------------------------------------------------------------------
# Deterministic parameter init (shapes follow the PyTorch __init__)
# ----------------------------------------------------------------------------
def _conv_params(key, out_c, in_c, k):
    # PyTorch Conv1d default: U(-b, b), b = 1/sqrt(in_c * k)
    k1, k2 = jax.random.split(key)
    bound = 1.0 / float(in_c * k) ** 0.5
    if k == 1:
        w = jax.random.uniform(k1, (out_c, in_c), jnp.float32, -bound, bound)
    else:
        w = jax.random.uniform(k1, (k, out_c, in_c), jnp.float32, -bound, bound)
    b = jax.random.uniform(k2, (out_c, 1), jnp.float32, -bound, bound)
    return w, b


def init_pg(key, num_layers, F, dim, C1, C3):
    keys = jax.random.split(key, 3 * num_layers + 3)
    p = {"conv_1x1_in": _conv_params(keys[0], F, dim, 1),
         "dil1": [], "dil2": [], "fusion": []}
    for i in range(num_layers):
        p["dil1"].append(_conv_params(keys[1 + 3 * i], F, F, 3))
        p["dil2"].append(_conv_params(keys[2 + 3 * i], F, F, 3))
        p["fusion"].append(_conv_params(keys[3 + 3 * i], F, 2 * F, 1))
    p["conv_out_1"] = _conv_params(keys[3 * num_layers + 1], C1, F, 1)
    p["conv_out_3"] = _conv_params(keys[3 * num_layers + 2], C3, F, 1)
    return p


def init_refinement(key, num_layers, F, dim, num_classes):
    keys = jax.random.split(key, 2 * num_layers + 2)
    p = {"conv_1x1": _conv_params(keys[0], F, dim, 1), "layers": []}
    for i in range(num_layers):
        wd, bd = _conv_params(keys[1 + 2 * i], F, F, 3)
        w1, b1 = _conv_params(keys[2 + 2 * i], F, F, 1)
        p["layers"].append((wd, bd, w1, b1))
    p["conv_out"] = _conv_params(keys[2 * num_layers + 1], num_classes, F, 1)
    return p


def init_ms_tcn2(key, cfg):
    L_PG, L_R, num_R = cfg["num_layers_PG"], cfg["num_layers_R"], cfg["num_R"]
    F, dim = cfg["num_f_maps"], cfg["dim"]
    C1, C3 = cfg["num_classes_1"], cfg["num_classes_3"]
    names = (["Rs_task1"] + [f"Rs_beh_{i}" for i in range(7)]
             + [f"Rs_ann_{i}" for i in range(2, 6)])
    keys = jax.random.split(key, 1 + len(names) * num_R)
    params = {"PG": init_pg(keys[0], L_PG, F, dim, C1, C3)}
    ki = 1
    for name in names:
        nc = C3 if name.startswith("Rs_beh") else C1
        params[name] = []
        for _ in range(num_R):
            params[name].append(init_refinement(keys[ki], L_R, F, nc, nc))
            ki += 1
    return params


# ----------------------------------------------------------------------------
# Pallas forward (fused stages)
# ----------------------------------------------------------------------------
_BEH_MAP = {"beh_0": "Rs_beh_1", "beh_1": "Rs_beh_1", "beh_2": "Rs_beh_2",
            "beh_3": "Rs_beh_3", "beh_4": "Rs_beh_3", "beh_5": "Rs_beh_1",
            "beh_6": "Rs_beh_1"}
_ANN_MAP = {"ann_1": "Rs_task1", "ann_2": "Rs_ann_2", "ann_3": "Rs_ann_3",
            "ann_4": "Rs_ann_4", "ann_5": "Rs_ann_5"}


def ms_tcn2_forward_pallas(params, x1, x2, x3, behaviour, annotator, cfg):
    L_PG, L_R = cfg["num_layers_PG"], cfg["num_layers_R"]
    pg = params["PG"]

    # All three streams through ONE fused PG kernel (shared trunk weights).
    out1, out2, out3 = pg_all_streams(x1, x2, x3, pg, L_PG)

    outs1 = [out1[None], refine_chain(out1, params["Rs_task1"], L_R)]
    outs2 = [out2[None]]
    outs3 = [out3[None]]

    if behaviour in _BEH_MAP:
        outs3.append(refine_chain(out3, params[_BEH_MAP[behaviour]], L_R))
    if annotator in _ANN_MAP:
        outs2.append(refine_chain(out2, params[_ANN_MAP[annotator]], L_R))

    return (jnp.concatenate(outs1, axis=0),
            jnp.concatenate(outs2, axis=0),
            jnp.concatenate(outs3, axis=0))


# ----------------------------------------------------------------------------
# Pure-JAX reference (layer-wise, mirrors the PyTorch module)
# ----------------------------------------------------------------------------
_HI = jax.lax.Precision.HIGHEST


def _ref_pointwise(x, w, b):
    return jnp.einsum("oc,nct->not", w, x, precision=_HI) + b[None]


def _ref_dilated3(x, w, b, d):
    N, C, T = x.shape
    xm = jnp.pad(x, ((0, 0), (0, 0), (d, 0)))[:, :, :T]
    xp = jnp.pad(x, ((0, 0), (0, 0), (0, d)))[:, :, d:]
    return (jnp.einsum("oc,nct->not", w[0], xm, precision=_HI)
            + jnp.einsum("oc,nct->not", w[1], x, precision=_HI)
            + jnp.einsum("oc,nct->not", w[2], xp, precision=_HI)) + b[None]


def _ref_pg_trunk(pg, x, L_PG):
    f = _ref_pointwise(x, *pg["conv_1x1_in"])
    for i in range(L_PG):
        d1, d2 = 2 ** (L_PG - 1 - i), 2 ** i
        wd1, bd1 = pg["dil1"][i]
        wd2, bd2 = pg["dil2"][i]
        wf, bf = pg["fusion"][i]
        c1 = _ref_dilated3(f, wd1, bd1, d1)
        c2 = _ref_dilated3(f, wd2, bd2, d2)
        fused = (jnp.einsum("oc,nct->not", wf, jnp.concatenate([c1, c2], axis=1),
                            precision=_HI) + bf[None])
        f = jnp.maximum(fused, 0.0) + f
    return f


def _ref_refine(R, x, L_R):
    out = _ref_pointwise(jax.nn.softmax(x, axis=1), *R["conv_1x1"])
    for i in range(L_R):
        wd, bd, w1, b1 = R["layers"][i]
        y = jnp.maximum(_ref_dilated3(out, wd, bd, 2 ** i), 0.0)
        out = out + _ref_pointwise(y, w1, b1)
    return _ref_pointwise(out, *R["conv_out"])


def ms_tcn2_forward_ref(params, x1, x2, x3, behaviour, annotator, cfg):
    L_PG, L_R = cfg["num_layers_PG"], cfg["num_layers_R"]
    pg = params["PG"]
    f1 = _ref_pg_trunk(pg, x1, L_PG)
    f2 = _ref_pg_trunk(pg, x2, L_PG)
    f3 = _ref_pg_trunk(pg, x3, L_PG)
    out1 = _ref_pointwise(f1, *pg["conv_out_1"])
    out2 = _ref_pointwise(f2, *pg["conv_out_1"])
    out3 = _ref_pointwise(f3, *pg["conv_out_3"])

    outputs_1, outputs_2, outputs_3 = [out1], [out2], [out3]
    for R in params["Rs_task1"]:
        out1 = _ref_refine(R, out1, L_R)
        outputs_1.append(out1)
    if behaviour in _BEH_MAP:
        for R in params[_BEH_MAP[behaviour]]:
            out3 = _ref_refine(R, out3, L_R)
            outputs_3.append(out3)
    if annotator in _ANN_MAP:
        for R in params[_ANN_MAP[annotator]]:
            out2 = _ref_refine(R, out2, L_R)
            outputs_2.append(out2)
    return jnp.stack(outputs_1), jnp.stack(outputs_2), jnp.stack(outputs_3)


# ----------------------------------------------------------------------------
if __name__ == "__main__":
    cfg = dict(num_layers_PG=3, num_layers_R=2, num_R=2,
               num_f_maps=8, dim=8, num_classes_1=8, num_classes_3=16)
    N, T = 2, 128

    key = jax.random.PRNGKey(0)
    kp, k1, k2, k3 = jax.random.split(key, 4)
    params = init_ms_tcn2(kp, cfg)
    x1 = jax.random.normal(k1, (N, cfg["dim"], T), jnp.float32)
    x2 = jax.random.normal(k2, (N, cfg["dim"], T), jnp.float32)
    x3 = jax.random.normal(k3, (N, cfg["dim"], T), jnp.float32)

    o1, o2, o3 = ms_tcn2_forward_pallas(params, x1, x2, x3, "beh_1", "ann_2", cfg)
    jax.block_until_ready((o1, o2, o3))

    r1, r2, r3 = ms_tcn2_forward_ref(params, x1, x2, x3, "beh_1", "ann_2", cfg)
    for got, ref in ((o1, r1), (o2, r2), (o3, r3)):
        assert got.shape == ref.shape, (got.shape, ref.shape)
        assert jnp.allclose(got, ref, rtol=2e-3, atol=2e-3), \
            float(jnp.max(jnp.abs(got - ref)))

    print("KERNEL_OK")
</pallas_src>

<mosaic_0001>
module attributes {stable_mosaic.version = 11 : i64} {
  func.func @_pg_stage_kernel(%arg0: i32, %arg1: memref<1x8x128xf32, #tpu.memory_space<vmem>>, %arg2: memref<8x8xf32, #tpu.memory_space<vmem>>, %arg3: memref<8x1xf32, #tpu.memory_space<vmem>>, %arg4: memref<3x8x24xf32, #tpu.memory_space<vmem>>, %arg5: memref<3x8x1xf32, #tpu.memory_space<vmem>>, %arg6: memref<3x8x24xf32, #tpu.memory_space<vmem>>, %arg7: memref<3x8x1xf32, #tpu.memory_space<vmem>>, %arg8: memref<3x8x16xf32, #tpu.memory_space<vmem>>, %arg9: memref<3x8x1xf32, #tpu.memory_space<vmem>>, %arg10: memref<8x8xf32, #tpu.memory_space<vmem>>, %arg11: memref<8x1xf32, #tpu.memory_space<vmem>>, %arg12: memref<16x8xf32, #tpu.memory_space<vmem>>, %arg13: memref<16x1xf32, #tpu.memory_space<vmem>>, %arg14: memref<1x8x128xf32, #tpu.memory_space<vmem>>, %arg15: memref<1x16x128xf32, #tpu.memory_space<vmem>>) attributes {dimension_semantics = [#tpu.dimension_semantics<parallel>], iteration_bounds = array<i64: 6>, scalar_prefetch = 0 : i64, scratch_operands = 0 : i64, tpu.core_type = #tpu.core_type<tc>, window_params = [{transform_indices = @transform_0, window_bounds = array<i64: 1, 8, 128>}, {pipeline_mode = #tpu.pipeline_mode<synchronous>, transform_indices = @transform_1, window_bounds = array<i64: 8, 8>}, {pipeline_mode = #tpu.pipeline_mode<synchronous>, transform_indices = @transform_2, window_bounds = array<i64: 8, 1>}, {pipeline_mode = #tpu.pipeline_mode<synchronous>, transform_indices = @transform_3, window_bounds = array<i64: 3, 8, 24>}, {pipeline_mode = #tpu.pipeline_mode<synchronous>, transform_indices = @transform_4, window_bounds = array<i64: 3, 8, 1>}, {pipeline_mode = #tpu.pipeline_mode<synchronous>, transform_indices = @transform_5, window_bounds = array<i64: 3, 8, 24>}, {pipeline_mode = #tpu.pipeline_mode<synchronous>, transform_indices = @transform_6, window_bounds = array<i64: 3, 8, 1>}, {pipeline_mode = #tpu.pipeline_mode<synchronous>, transform_indices = @transform_7, window_bounds = array<i64: 3, 8, 16>}, {pipeline_mode = #tpu.pipeline_mode<synchronous>, transform_indices = @transform_8, window_bounds = array<i64: 3, 8, 1>}, {pipeline_mode = #tpu.pipeline_mode<synchronous>, transform_indices = @transform_9, window_bounds = array<i64: 8, 8>}, {pipeline_mode = #tpu.pipeline_mode<synchronous>, transform_indices = @transform_10, window_bounds = array<i64: 8, 1>}, {pipeline_mode = #tpu.pipeline_mode<synchronous>, transform_indices = @transform_11, window_bounds = array<i64: 16, 8>}, {pipeline_mode = #tpu.pipeline_mode<synchronous>, transform_indices = @transform_12, window_bounds = array<i64: 16, 1>}, {transform_indices = @transform_13, window_bounds = array<i64: 1, 8, 128>}, {transform_indices = @transform_14, window_bounds = array<i64: 1, 16, 128>}]} {
    %0 = tpu.iota {dimensions = array<i32: 1>} : vector<1x128xi32>
    %c0 = arith.constant 0 : index
    %c0_0 = arith.constant 0 : index
    %1 = vector.load %arg2[%c0, %c0_0] : memref<8x8xf32, #tpu.memory_space<vmem>>, vector<8x8xf32>
    %c0_1 = arith.constant 0 : index
    %c0_2 = arith.constant 0 : index
    %c0_3 = arith.constant 0 : index
    %2 = vector.load %arg1[%c0_1, %c0_2, %c0_3] : memref<1x8x128xf32, #tpu.memory_space<vmem>>, vector<1x8x128xf32>
    %3 = vector.shape_cast %2 : vector<1x8x128xf32> to vector<8x128xf32>
    %cst = arith.constant dense<0.000000e+00> : vector<8x128xf32>
    %4 = tpu.matmul %1, %3, %cst {dimension_numbers = #tpu.dot_dimension_numbers<[1], [0], [0], [1], [0, 0, 1, 1], [], []>} : vector<8x8xf32>, vector<8x128xf32>, vector<8x128xf32> -> vector<8x128xf32>
    %c0_4 = arith.constant 0 : index
    %c0_5 = arith.constant 0 : index
    %5 = vector.load %arg3[%c0_4, %c0_5] : memref<8x1xf32, #tpu.memory_space<vmem>>, vector<8x1xf32>
    %6 = vector.broadcast %5 : vector<8x1xf32> to vector<8x128xf32>
    %7 = arith.addf %4, %6 : vector<8x128xf32>
    %c0_6 = arith.constant 0 : index
    %c0_7 = arith.constant 0 : index
    %c0_8 = arith.constant 0 : index
    %8 = vector.load %arg4[%c0_6, %c0_7, %c0_8] : memref<3x8x24xf32, #tpu.memory_space<vmem>>, vector<1x8x24xf32>
    %9 = vector.shape_cast %8 : vector<1x8x24xf32> to vector<8x24xf32>
    %c0_9 = arith.constant 0 : index
    %c0_10 = arith.constant 0 : index
    %c0_11 = arith.constant 0 : index
    %10 = vector.load %arg5[%c0_9, %c0_10, %c0_11] : memref<3x8x1xf32, #tpu.memory_space<vmem>>, vector<1x8x1xf32>
    %11 = vector.shape_cast %10 : vector<1x8x1xf32> to vector<8x1xf32>
    %c4_i32 = arith.constant 4 : i32
    %12 = vector.broadcast %c4_i32 : i32 to vector<1x128xi32>
    %13 = arith.cmpi sge, %0, %12 : vector<1x128xi32>
    %c4_i32_12 = arith.constant 4 : i32
    %14 = tpu.dynamic_rotate %7 by %c4_i32_12 dim 1 : vector<8x128xf32>, i32 -> vector<8x128xf32>
    %cst_13 = arith.constant 0.000000e+00 : f32
    %15 = vector.shape_cast %13 : vector<1x128xi1> to vector<1x128xi1>
    %16 = vector.broadcast %15 : vector<1x128xi1> to vector<8x128xi1>
    %17 = vector.broadcast %cst_13 : f32 to vector<8x128xf32>
    %18 = arith.select %16, %14, %17 : vector<8x128xi1>, vector<8x128xf32>
    %c124_i32 = arith.constant 124 : i32
    %19 = vector.broadcast %c124_i32 : i32 to vector<1x128xi32>
    %20 = arith.cmpi slt, %0, %19 : vector<1x128xi32>
    %c124_i32_14 = arith.constant 124 : i32
    %21 = tpu.dynamic_rotate %7 by %c124_i32_14 dim 1 : vector<8x128xf32>, i32 -> vector<8x128xf32>
    %cst_15 = arith.constant 0.000000e+00 : f32
    %22 = vector.shape_cast %20 : vector<1x128xi1> to vector<1x128xi1>
    %23 = vector.broadcast %22 : vector<1x128xi1> to vector<8x128xi1>
    %24 = vector.broadcast %cst_15 : f32 to vector<8x128xf32>
    %25 = arith.select %23, %21, %24 : vector<8x128xi1>, vector<8x128xf32>
    %26 = tpu.concatenate %18, %7, %25 in 0 : vector<8x128xf32>, vector<8x128xf32>, vector<8x128xf32> -> vector<24x128xf32>
    %cst_16 = arith.constant dense<0.000000e+00> : vector<8x128xf32>
    %27 = tpu.matmul %9, %26, %cst_16 {dimension_numbers = #tpu.dot_dimension_numbers<[1], [0], [0], [1], [0, 0, 1, 1], [], []>} : vector<8x24xf32>, vector<24x128xf32>, vector<8x128xf32> -> vector<8x128xf32>
    %28 = vector.broadcast %11 : vector<8x1xf32> to vector<8x128xf32>
    %29 = arith.addf %27, %28 : vector<8x128xf32>
    %c0_17 = arith.constant 0 : index
    %c0_18 = arith.constant 0 : index
    %c0_19 = arith.constant 0 : index
    %30 = vector.load %arg6[%c0_17, %c0_18, %c0_19] : memref<3x8x24xf32, #tpu.memory_space<vmem>>, vector<1x8x24xf32>
    %31 = vector.shape_cast %30 : vector<1x8x24xf32> to vector<8x24xf32>
    %c0_20 = arith.constant 0 : index
    %c0_21 = arith.constant 0 : index
    %c0_22 = arith.constant 0 : index
    %32 = vector.load %arg7[%c0_20, %c0_21, %c0_22] : memref<3x8x1xf32, #tpu.memory_space<vmem>>, vector<1x8x1xf32>
    %33 = vector.shape_cast %32 : vector<1x8x1xf32> to vector<8x1xf32>
    %c1_i32 = arith.constant 1 : i32
    %34 = vector.broadcast %c1_i32 : i32 to vector<1x128xi32>
    %35 = arith.cmpi sge, %0, %34 : vector<1x128xi32>
    %c1_i32_23 = arith.constant 1 : i32
    %36 = tpu.dynamic_rotate %7 by %c1_i32_23 dim 1 : vector<8x128xf32>, i32 -> vector<8x128xf32>
    %cst_24 = arith.constant 0.000000e+00 : f32
    %37 = vector.shape_cast %35 : vector<1x128xi1> to vector<1x128xi1>
    %38 = vector.broadcast %37 : vector<1x128xi1> to vector<8x128xi1>
    %39 = vector.broadcast %cst_24 : f32 to vector<8x128xf32>
    %40 = arith.select %38, %36, %39 : vector<8x128xi1>, vector<8x128xf32>
    %c127_i32 = arith.constant 127 : i32
    %41 = vector.broadcast %c127_i32 : i32 to vector<1x128xi32>
    %42 = arith.cmpi slt, %0, %41 : vector<1x128xi32>
    %c127_i32_25 = arith.constant 127 : i32
    %43 = tpu.dynamic_rotate %7 by %c127_i32_25 dim 1 : vector<8x128xf32>, i32 -> vector<8x128xf32>
    %cst_26 = arith.constant 0.000000e+00 : f32
    %44 = vector.shape_cast %42 : vector<1x128xi1> to vector<1x128xi1>
    %45 = vector.broadcast %44 : vector<1x128xi1> to vector<8x128xi1>
    %46 = vector.broadcast %cst_26 : f32 to vector<8x128xf32>
    %47 = arith.select %45, %43, %46 : vector<8x128xi1>, vector<8x128xf32>
    %48 = tpu.concatenate %40, %7, %47 in 0 : vector<8x128xf32>, vector<8x128xf32>, vector<8x128xf32> -> vector<24x128xf32>
    %cst_27 = arith.constant dense<0.000000e+00> : vector<8x128xf32>
    %49 = tpu.matmul %31, %48, %cst_27 {dimension_numbers = #tpu.dot_dimension_numbers<[1], [0], [0], [1], [0, 0, 1, 1], [], []>} : vector<8x24xf32>, vector<24x128xf32>, vector<8x128xf32> -> vector<8x128xf32>
    %50 = vector.broadcast %33 : vector<8x1xf32> to vector<8x128xf32>
    %51 = arith.addf %49, %50 : vector<8x128xf32>
    %52 = tpu.concatenate %29, %51 in 0 : vector<8x128xf32>, vector<8x128xf32> -> vector<16x128xf32>
    %c0_28 = arith.constant 0 : index
    %c0_29 = arith.constant 0 : index
    %c0_30 = arith.constant 0 : index
    %53 = vector.load %arg8[%c0_28, %c0_29, %c0_30] : memref<3x8x16xf32, #tpu.memory_space<vmem>>, vector<1x8x16xf32>
    %54 = vector.shape_cast %53 : vector<1x8x16xf32> to vector<8x16xf32>
    %cst_31 = arith.constant dense<0.000000e+00> : vector<8x128xf32>
    %55 = tpu.matmul %54, %52, %cst_31 {dimension_numbers = #tpu.dot_dimension_numbers<[1], [0], [0], [1], [0, 0, 1, 1], [], []>} : vector<8x16xf32>, vector<16x128xf32>, vector<8x128xf32> -> vector<8x128xf32>
    %c0_32 = arith.constant 0 : index
    %c0_33 = arith.constant 0 : index
    %c0_34 = arith.constant 0 : index
    %56 = vector.load %arg9[%c0_32, %c0_33, %c0_34] : memref<3x8x1xf32, #tpu.memory_space<vmem>>, vector<1x8x1xf32>
    %57 = vector.shape_cast %56 : vector<1x8x1xf32> to vector<8x1xf32>
    %58 = vector.broadcast %57 : vector<8x1xf32> to vector<8x128xf32>
    %59 = arith.addf %55, %58 : vector<8x128xf32>
    %cst_35 = arith.constant 0.000000e+00 : f32
    %60 = vector.broadcast %cst_35 : f32 to vector<8x128xf32>
    %61 = arith.maximumf %59, %60 : vector<8x128xf32>
    %62 = arith.addf %61, %7 : vector<8x128xf32>
    %c1 = arith.constant 1 : index
    %c0_36 = arith.constant 0 : index
    %c0_37 = arith.constant 0 : index
    %63 = vector.load %arg4[%c1, %c0_36, %c0_37] : memref<3x8x24xf32, #tpu.memory_space<vmem>>, vector<1x8x24xf32>
    %64 = vector.shape_cast %63 : vector<1x8x24xf32> to vector<8x24xf32>
    %c1_38 = arith.constant 1 : index
    %c0_39 = arith.constant 0 : index
    %c0_40 = arith.constant 0 : index
    %65 = vector.load %arg5[%c1_38, %c0_39, %c0_40] : memref<3x8x1xf32, #tpu.memory_space<vmem>>, vector<1x8x1xf32>
    %66 = vector.shape_cast %65 : vector<1x8x1xf32> to vector<8x1xf32>
    %c2_i32 = arith.constant 2 : i32
    %67 = vector.broadcast %c2_i32 : i32 to vector<1x128xi32>
    %68 = arith.cmpi sge, %0, %67 : vector<1x128xi32>
    %c2_i32_41 = arith.constant 2 : i32
    %69 = tpu.dynamic_rotate %62 by %c2_i32_41 dim 1 : vector<8x128xf32>, i32 -> vector<8x128xf32>
    %cst_42 = arith.constant 0.000000e+00 : f32
    %70 = vector.shape_cast %68 : vector<1x128xi1> to vector<1x128xi1>
    %71 = vector.broadcast %70 : vector<1x128xi1> to vector<8x128xi1>
    %72 = vector.broadcast %cst_42 : f32 to vector<8x128xf32>
    %73 = arith.select %71, %69, %72 : vector<8x128xi1>, vector<8x128xf32>
    %c126_i32 = arith.constant 126 : i32
    %74 = vector.broadcast %c126_i32 : i32 to vector<1x128xi32>
    %75 = arith.cmpi slt, %0, %74 : vector<1x128xi32>
    %c126_i32_43 = arith.constant 126 : i32
    %76 = tpu.dynamic_rotate %62 by %c126_i32_43 dim 1 : vector<8x128xf32>, i32 -> vector<8x128xf32>
    %cst_44 = arith.constant 0.000000e+00 : f32
    %77 = vector.shape_cast %75 : vector<1x128xi1> to vector<1x128xi1>
    %78 = vector.broadcast %77 : vector<1x128xi1> to vector<8x128xi1>
    %79 = vector.broadcast %cst_44 : f32 to vector<8x128xf32>
    %80 = arith.select %78, %76, %79 : vector<8x128xi1>, vector<8x128xf32>
    %81 = tpu.concatenate %73, %62, %80 in 0 : vector<8x128xf32>, vector<8x128xf32>, vector<8x128xf32> -> vector<24x128xf32>
    %cst_45 = arith.constant dense<0.000000e+00> : vector<8x128xf32>
    %82 = tpu.matmul %64, %81, %cst_45 {dimension_numbers = #tpu.dot_dimension_numbers<[1], [0], [0], [1], [0, 0, 1, 1], [], []>} : vector<8x24xf32>, vector<24x128xf32>, vector<8x128xf32> -> vector<8x128xf32>
    %83 = vector.broadcast %66 : vector<8x1xf32> to vector<8x128xf32>
    %84 = arith.addf %82, %83 : vector<8x128xf32>
    %c1_46 = arith.constant 1 : index
    %c0_47 = arith.constant 0 : index
    %c0_48 = arith.constant 0 : index
    %85 = vector.load %arg6[%c1_46, %c0_47, %c0_48] : memref<3x8x24xf32, #tpu.memory_space<vmem>>, vector<1x8x24xf32>
    %86 = vector.shape_cast %85 : vector<1x8x24xf32> to vector<8x24xf32>
    %c1_49 = arith.constant 1 : index
    %c0_50 = arith.constant 0 : index
    %c0_51 = arith.constant 0 : index
    %87 = vector.load %arg7[%c1_49, %c0_50, %c0_51] : memref<3x8x1xf32, #tpu.memory_space<vmem>>, vector<1x8x1xf32>
    %88 = vector.shape_cast %87 : vector<1x8x1xf32> to vector<8x1xf32>
    %c2_i32_52 = arith.constant 2 : i32
    %89 = vector.broadcast %c2_i32_52 : i32 to vector<1x128xi32>
    %90 = arith.cmpi sge, %0, %89 : vector<1x128xi32>
    %c2_i32_53 = arith.constant 2 : i32
    %91 = tpu.dynamic_rotate %62 by %c2_i32_53 dim 1 : vector<8x128xf32>, i32 -> vector<8x128xf32>
    %cst_54 = arith.constant 0.000000e+00 : f32
    %92 = vector.shape_cast %90 : vector<1x128xi1> to vector<1x128xi1>
    %93 = vector.broadcast %92 : vector<1x128xi1> to vector<8x128xi1>
    %94 = vector.broadcast %cst_54 : f32 to vector<8x128xf32>
    %95 = arith.select %93, %91, %94 : vector<8x128xi1>, vector<8x128xf32>
    %c126_i32_55 = arith.constant 126 : i32
    %96 = vector.broadcast %c126_i32_55 : i32 to vector<1x128xi32>
    %97 = arith.cmpi slt, %0, %96 : vector<1x128xi32>
    %c126_i32_56 = arith.constant 126 : i32
    %98 = tpu.dynamic_rotate %62 by %c126_i32_56 dim 1 : vector<8x128xf32>, i32 -> vector<8x128xf32>
    %cst_57 = arith.constant 0.000000e+00 : f32
    %99 = vector.shape_cast %97 : vector<1x128xi1> to vector<1x128xi1>
    %100 = vector.broadcast %99 : vector<1x128xi1> to vector<8x128xi1>
    %101 = vector.broadcast %cst_57 : f32 to vector<8x128xf32>
    %102 = arith.select %100, %98, %101 : vector<8x128xi1>, vector<8x128xf32>
    %103 = tpu.concatenate %95, %62, %102 in 0 : vector<8x128xf32>, vector<8x128xf32>, vector<8x128xf32> -> vector<24x128xf32>
    %cst_58 = arith.constant dense<0.000000e+00> : vector<8x128xf32>
    %104 = tpu.matmul %86, %103, %cst_58 {dimension_numbers = #tpu.dot_dimension_numbers<[1], [0], [0], [1], [0, 0, 1, 1], [], []>} : vector<8x24xf32>, vector<24x128xf32>, vector<8x128xf32> -> vector<8x128xf32>
    %105 = vector.broadcast %88 : vector<8x1xf32> to vector<8x128xf32>
    %106 = arith.addf %104, %105 : vector<8x128xf32>
    %107 = tpu.concatenate %84, %106 in 0 : vector<8x128xf32>, vector<8x128xf32> -> vector<16x128xf32>
    %c1_59 = arith.constant 1 : index
    %c0_60 = arith.constant 0 : index
    %c0_61 = arith.constant 0 : index
    %108 = vector.load %arg8[%c1_59, %c0_60, %c0_61] : memref<3x8x16xf32, #tpu.memory_space<vmem>>, vector<1x8x16xf32>
    %109 = vector.shape_cast %108 : vector<1x8x16xf32> to vector<8x16xf32>
    %cst_62 = arith.constant dense<0.000000e+00> : vector<8x128xf32>
    %110 = tpu.matmul %109, %107, %cst_62 {dimension_numbers = #tpu.dot_dimension_numbers<[1], [0], [0], [1], [0, 0, 1, 1], [], []>} : vector<8x16xf32>, vector<16x128xf32>, vector<8x128xf32> -> vector<8x128xf32>
    %c1_63 = arith.constant 1 : index
    %c0_64 = arith.constant 0 : index
    %c0_65 = arith.constant 0 : index
    %111 = vector.load %arg9[%c1_63, %c0_64, %c0_65] : memref<3x8x1xf32, #tpu.memory_space<vmem>>, vector<1x8x1xf32>
    %112 = vector.shape_cast %111 : vector<1x8x1xf32> to vector<8x1xf32>
    %113 = vector.broadcast %112 : vector<8x1xf32> to vector<8x128xf32>
    %114 = arith.addf %110, %113 : vector<8x128xf32>
    %cst_66 = arith.constant 0.000000e+00 : f32
    %115 = vector.broadcast %cst_66 : f32 to vector<8x128xf32>
    %116 = arith.maximumf %114, %115 : vector<8x128xf32>
    %117 = arith.addf %116, %62 : vector<8x128xf32>
    %c2 = arith.constant 2 : index
    %c0_67 = arith.constant 0 : index
    %c0_68 = arith.constant 0 : index
    %118 = vector.load %arg4[%c2, %c0_67, %c0_68] : memref<3x8x24xf32, #tpu.memory_space<vmem>>, vector<1x8x24xf32>
    %119 = vector.shape_cast %118 : vector<1x8x24xf32> to vector<8x24xf32>
    %c2_69 = arith.constant 2 : index
    %c0_70 = arith.constant 0 : index
    %c0_71 = arith.constant 0 : index
    %120 = vector.load %arg5[%c2_69, %c0_70, %c0_71] : memref<3x8x1xf32, #tpu.memory_space<vmem>>, vector<1x8x1xf32>
    %121 = vector.shape_cast %120 : vector<1x8x1xf32> to vector<8x1xf32>
    %c1_i32_72 = arith.constant 1 : i32
    %122 = vector.broadcast %c1_i32_72 : i32 to vector<1x128xi32>
    %123 = arith.cmpi sge, %0, %122 : vector<1x128xi32>
    %c1_i32_73 = arith.constant 1 : i32
    %124 = tpu.dynamic_rotate %117 by %c1_i32_73 dim 1 : vector<8x128xf32>, i32 -> vector<8x128xf32>
    %cst_74 = arith.constant 0.000000e+00 : f32
    %125 = vector.shape_cast %123 : vector<1x128xi1> to vector<1x128xi1>
    %126 = vector.broadcast %125 : vector<1x128xi1> to vector<8x128xi1>
    %127 = vector.broadcast %cst_74 : f32 to vector<8x128xf32>
    %128 = arith.select %126, %124, %127 : vector<8x128xi1>, vector<8x128xf32>
    %c127_i32_75 = arith.constant 127 : i32
    %129 = vector.broadcast %c127_i32_75 : i32 to vector<1x128xi32>
    %130 = arith.cmpi slt, %0, %129 : vector<1x128xi32>
    %c127_i32_76 = arith.constant 127 : i32
    %131 = tpu.dynamic_rotate %117 by %c127_i32_76 dim 1 : vector<8x128xf32>, i32 -> vector<8x128xf32>
    %cst_77 = arith.constant 0.000000e+00 : f32
    %132 = vector.shape_cast %130 : vector<1x128xi1> to vector<1x128xi1>
    %133 = vector.broadcast %132 : vector<1x128xi1> to vector<8x128xi1>
    %134 = vector.broadcast %cst_77 : f32 to vector<8x128xf32>
    %135 = arith.select %133, %131, %134 : vector<8x128xi1>, vector<8x128xf32>
    %136 = tpu.concatenate %128, %117, %135 in 0 : vector<8x128xf32>, vector<8x128xf32>, vector<8x128xf32> -> vector<24x128xf32>
    %cst_78 = arith.constant dense<0.000000e+00> : vector<8x128xf32>
    %137 = tpu.matmul %119, %136, %cst_78 {dimension_numbers = #tpu.dot_dimension_numbers<[1], [0], [0], [1], [0, 0, 1, 1], [], []>} : vector<8x24xf32>, vector<24x128xf32>, vector<8x128xf32> -> vector<8x128xf32>
    %138 = vector.broadcast %121 : vector<8x1xf32> to vector<8x128xf32>
    %139 = arith.addf %137, %138 : vector<8x128xf32>
    %c2_79 = arith.constant 2 : index
    %c0_80 = arith.constant 0 : index
    %c0_81 = arith.constant 0 : index
    %140 = vector.load %arg6[%c2_79, %c0_80, %c0_81] : memref<3x8x24xf32, #tpu.memory_space<vmem>>, vector<1x8x24xf32>
    %141 = vector.shape_cast %140 : vector<1x8x24xf32> to vector<8x24xf32>
    %c2_82 = arith.constant 2 : index
    %c0_83 = arith.constant 0 : index
    %c0_84 = arith.constant 0 : index
    %142 = vector.load %arg7[%c2_82, %c0_83, %c0_84] : memref<3x8x1xf32, #tpu.memory_space<vmem>>, vector<1x8x1xf32>
    %143 = vector.shape_cast %142 : vector<1x8x1xf32> to vector<8x1xf32>
    %c4_i32_85 = arith.constant 4 : i32
    %144 = vector.broadcast %c4_i32_85 : i32 to vector<1x128xi32>
    %145 = arith.cmpi sge, %0, %144 : vector<1x128xi32>
    %c4_i32_86 = arith.constant 4 : i32
    %146 = tpu.dynamic_rotate %117 by %c4_i32_86 dim 1 : vector<8x128xf32>, i32 -> vector<8x128xf32>
    %cst_87 = arith.constant 0.000000e+00 : f32
    %147 = vector.shape_cast %145 : vector<1x128xi1> to vector<1x128xi1>
    %148 = vector.broadcast %147 : vector<1x128xi1> to vector<8x128xi1>
    %149 = vector.broadcast %cst_87 : f32 to vector<8x128xf32>
    %150 = arith.select %148, %146, %149 : vector<8x128xi1>, vector<8x128xf32>
    %c124_i32_88 = arith.constant 124 : i32
    %151 = vector.broadcast %c124_i32_88 : i32 to vector<1x128xi32>
    %152 = arith.cmpi slt, %0, %151 : vector<1x128xi32>
    %c124_i32_89 = arith.constant 124 : i32
    %153 = tpu.dynamic_rotate %117 by %c124_i32_89 dim 1 : vector<8x128xf32>, i32 -> vector<8x128xf32>
    %cst_90 = arith.constant 0.000000e+00 : f32
    %154 = vector.shape_cast %152 : vector<1x128xi1> to vector<1x128xi1>
    %155 = vector.broadcast %154 : vector<1x128xi1> to vector<8x128xi1>
    %156 = vector.broadcast %cst_90 : f32 to vector<8x128xf32>
    %157 = arith.select %155, %153, %156 : vector<8x128xi1>, vector<8x128xf32>
    %158 = tpu.concatenate %150, %117, %157 in 0 : vector<8x128xf32>, vector<8x128xf32>, vector<8x128xf32> -> vector<24x128xf32>
    %cst_91 = arith.constant dense<0.000000e+00> : vector<8x128xf32>
    %159 = tpu.matmul %141, %158, %cst_91 {dimension_numbers = #tpu.dot_dimension_numbers<[1], [0], [0], [1], [0, 0, 1, 1], [], []>} : vector<8x24xf32>, vector<24x128xf32>, vector<8x128xf32> -> vector<8x128xf32>
    %160 = vector.broadcast %143 : vector<8x1xf32> to vector<8x128xf32>
    %161 = arith.addf %159, %160 : vector<8x128xf32>
    %162 = tpu.concatenate %139, %161 in 0 : vector<8x128xf32>, vector<8x128xf32> -> vector<16x128xf32>
    %c2_92 = arith.constant 2 : index
    %c0_93 = arith.constant 0 : index
    %c0_94 = arith.constant 0 : index
    %163 = vector.load %arg8[%c2_92, %c0_93, %c0_94] : memref<3x8x16xf32, #tpu.memory_space<vmem>>, vector<1x8x16xf32>
    %164 = vector.shape_cast %163 : vector<1x8x16xf32> to vector<8x16xf32>
    %cst_95 = arith.constant dense<0.000000e+00> : vector<8x128xf32>
    %165 = tpu.matmul %164, %162, %cst_95 {dimension_numbers = #tpu.dot_dimension_numbers<[1], [0], [0], [1], [0, 0, 1, 1], [], []>} : vector<8x16xf32>, vector<16x128xf32>, vector<8x128xf32> -> vector<8x128xf32>
    %c2_96 = arith.constant 2 : index
    %c0_97 = arith.constant 0 : index
    %c0_98 = arith.constant 0 : index
    %166 = vector.load %arg9[%c2_96, %c0_97, %c0_98] : memref<3x8x1xf32, #tpu.memory_space<vmem>>, vector<1x8x1xf32>
    %167 = vector.shape_cast %166 : vector<1x8x1xf32> to vector<8x1xf32>
    %168 = vector.broadcast %167 : vector<8x1xf32> to vector<8x128xf32>
    %169 = arith.addf %165, %168 : vector<8x128xf32>
    %cst_99 = arith.constant 0.000000e+00 : f32
    %170 = vector.broadcast %cst_99 : f32 to vector<8x128xf32>
    %171 = arith.maximumf %169, %170 : vector<8x128xf32>
    %172 = arith.addf %171, %117 : vector<8x128xf32>
    %c0_100 = arith.constant 0 : index
    %c0_101 = arith.constant 0 : index
    %173 = vector.load %arg10[%c0_100, %c0_101] : memref<8x8xf32, #tpu.memory_space<vmem>>, vector<8x8xf32>
    %cst_102 = arith.constant dense<0.000000e+00> : vector<8x128xf32>
    %174 = tpu.matmul %173, %172, %cst_102 {dimension_numbers = #tpu.dot_dimension_numbers<[1], [0], [0], [1], [0, 0, 1, 1], [], []>} : vector<8x8xf32>, vector<8x128xf32>, vector<8x128xf32> -> vector<8x128xf32>
    %c0_103 = arith.constant 0 : index
    %c0_104 = arith.constant 0 : index
    %175 = vector.load %arg11[%c0_103, %c0_104] : memref<8x1xf32, #tpu.memory_space<vmem>>, vector<8x1xf32>
    %176 = vector.broadcast %175 : vector<8x1xf32> to vector<8x128xf32>
    %177 = arith.addf %174, %176 : vector<8x128xf32>
    %c0_105 = arith.constant 0 : index
    %c0_106 = arith.constant 0 : index
    %c0_107 = arith.constant 0 : index
    %178 = vector.load %arg14[%c0_105, %c0_106, %c0_107] : memref<1x8x128xf32, #tpu.memory_space<vmem>>, vector<1x8x128xf32>
    %179 = vector.shape_cast %178 : vector<1x8x128xf32> to vector<8x128xf32>
    %180 = vector.shape_cast %177 : vector<8x128xf32> to vector<1x8x128xf32>
    tpu.vector_store %arg14[%c0_105, %c0_106, %c0_107], %180 {strides = array<i32>} : memref<1x8x128xf32, #tpu.memory_space<vmem>>, vector<1x8x128xf32>,
    %c0_108 = arith.constant 0 : index
    %c0_109 = arith.constant 0 : index
    %181 = vector.load %arg12[%c0_108, %c0_109] : memref<16x8xf32, #tpu.memory_space<vmem>>, vector<16x8xf32>
    %cst_110 = arith.constant dense<0.000000e+00> : vector<16x128xf32>
    %182 = tpu.matmul %181, %172, %cst_110 {dimension_numbers = #tpu.dot_dimension_numbers<[1], [0], [0], [1], [0, 0, 1, 1], [], []>} : vector<16x8xf32>, vector<8x128xf32>, vector<16x128xf32> -> vector<16x128xf32>
    %c0_111 = arith.constant 0 : index
    %c0_112 = arith.constant 0 : index
    %183 = vector.load %arg13[%c0_111, %c0_112] : memref<16x1xf32, #tpu.memory_space<vmem>>, vector<16x1xf32>
    %184 = vector.broadcast %183 : vector<16x1xf32> to vector<16x128xf32>
    %185 = arith.addf %182, %184 : vector<16x128xf32>
    %c0_113 = arith.constant 0 : index
    %c0_114 = arith.constant 0 : index
    %c0_115 = arith.constant 0 : index
    %186 = vector.load %arg15[%c0_113, %c0_114, %c0_115] : memref<1x16x128xf32, #tpu.memory_space<vmem>>, vector<1x16x128xf32>
    %187 = vector.shape_cast %186 : vector<1x16x128xf32> to vector<16x128xf32>
    %188 = vector.shape_cast %185 : vector<16x128xf32> to vector<1x16x128xf32>
    tpu.vector_store %arg15[%c0_113, %c0_114, %c0_115], %188 {strides = array<i32>} : memref<1x16x128xf32, #tpu.memory_space<vmem>>, vector<1x16x128xf32>,
    return
  }
  func.func @transform_0(%arg0: i32) -> (i32, i32, i32) {
    %c0_i32 = arith.constant 0 : i32
    %c0_i32_0 = arith.constant 0 : i32
    %c0_i32_1 = arith.constant 0 : i32
    return %arg0, %c0_i32, %c0_i32_0 : i32, i32, i32
  }
  func.func @transform_1(%arg0: i32) -> (i32, i32) {
    %c0_i32 = arith.constant 0 : i32
    %c0_i32_0 = arith.constant 0 : i32
    %c0_i32_1 = arith.constant 0 : i32
    return %c0_i32, %c0_i32_0 : i32, i32
  }
  func.func @transform_2(%arg0: i32) -> (i32, i32) {
    %c0_i32 = arith.constant 0 : i32
    %c0_i32_0 = arith.constant 0 : i32
    %c0_i32_1 = arith.constant 0 : i32
    return %c0_i32, %c0_i32_0 : i32, i32
  }
  func.func @transform_3(%arg0: i32) -> (i32, i32, i32) {
    %c0_i32 = arith.constant 0 : i32
    %c0_i32_0 = arith.constant 0 : i32
    %c0_i32_1 = arith.constant 0 : i32
    %c0_i32_2 = arith.constant 0 : i32
    return %c0_i32, %c0_i32_0, %c0_i32_1 : i32, i32, i32
  }
  func.func @transform_4(%arg0: i32) -> (i32, i32, i32) {
    %c0_i32 = arith.constant 0 : i32
    %c0_i32_0 = arith.constant 0 : i32
    %c0_i32_1 = arith.constant 0 : i32
    %c0_i32_2 = arith.constant 0 : i32
    return %c0_i32, %c0_i32_0, %c0_i32_1 : i32, i32, i32
  }
  func.func @transform_5(%arg0: i32) -> (i32, i32, i32) {
    %c0_i32 = arith.constant 0 : i32
    %c0_i32_0 = arith.constant 0 : i32
    %c0_i32_1 = arith.constant 0 : i32
    %c0_i32_2 = arith.constant 0 : i32
    return %c0_i32, %c0_i32_0, %c0_i32_1 : i32, i32, i32
  }
  func.func @transform_6(%arg0: i32) -> (i32, i32, i32) {
    %c0_i32 = arith.constant 0 : i32
    %c0_i32_0 = arith.constant 0 : i32
    %c0_i32_1 = arith.constant 0 : i32
    %c0_i32_2 = arith.constant 0 : i32
    return %c0_i32, %c0_i32_0, %c0_i32_1 : i32, i32, i32
  }
  func.func @transform_7(%arg0: i32) -> (i32, i32, i32) {
    %c0_i32 = arith.constant 0 : i32
    %c0_i32_0 = arith.constant 0 : i32
    %c0_i32_1 = arith.constant 0 : i32
    %c0_i32_2 = arith.constant 0 : i32
    return %c0_i32, %c0_i32_0, %c0_i32_1 : i32, i32, i32
  }
  func.func @transform_8(%arg0: i32) -> (i32, i32, i32) {
    %c0_i32 = arith.constant 0 : i32
    %c0_i32_0 = arith.constant 0 : i32
    %c0_i32_1 = arith.constant 0 : i32
    %c0_i32_2 = arith.constant 0 : i32
    return %c0_i32, %c0_i32_0, %c0_i32_1 : i32, i32, i32
  }
  func.func @transform_9(%arg0: i32) -> (i32, i32) {
    %c0_i32 = arith.constant 0 : i32
    %c0_i32_0 = arith.constant 0 : i32
    %c0_i32_1 = arith.constant 0 : i32
    return %c0_i32, %c0_i32_0 : i32, i32
  }
  func.func @transform_10(%arg0: i32) -> (i32, i32) {
    %c0_i32 = arith.constant 0 : i32
    %c0_i32_0 = arith.constant 0 : i32
    %c0_i32_1 = arith.constant 0 : i32
    return %c0_i32, %c0_i32_0 : i32, i32
  }
  func.func @transform_11(%arg0: i32) -> (i32, i32) {
    %c0_i32 = arith.constant 0 : i32
    %c0_i32_0 = arith.constant 0 : i32
    %c0_i32_1 = arith.constant 0 : i32
    return %c0_i32, %c0_i32_0 : i32, i32
  }
  func.func @transform_12(%arg0: i32) -> (i32, i32) {
    %c0_i32 = arith.constant 0 : i32
    %c0_i32_0 = arith.constant 0 : i32
    %c0_i32_1 = arith.constant 0 : i32
    return %c0_i32, %c0_i32_0 : i32, i32
  }
  func.func @transform_13(%arg0: i32) -> (i32, i32, i32) {
    %c0_i32 = arith.constant 0 : i32
    %c0_i32_0 = arith.constant 0 : i32
    %c0_i32_1 = arith.constant 0 : i32
    return %arg0, %c0_i32, %c0_i32_0 : i32, i32, i32
  }
  func.func @transform_14(%arg0: i32) -> (i32, i32, i32) {
    %c0_i32 = arith.constant 0 : i32
    %c0_i32_0 = arith.constant 0 : i32
    %c0_i32_1 = arith.constant 0 : i32
    return %arg0, %c0_i32, %c0_i32_0 : i32, i32, i32
  }
}

</mosaic_0001>

<llo_original>
// kernel: tpu_custom_call.1
$region0: #{tpu_custom_call.1}
  #allocation0 [shape = 'u32[]', space=smem, size = 0x4, offset = 0x4, fixed_abs, tag = 'smem constant byte address 0x4 - core index']
  #allocation1 [shape = 'u32[144,128]{1,0:T(1,128)}', space=vmem, size = 0x12000, scoped, tag = 'internal scratch']
  %s0 = inlined_call_operand.vmem [shape: f32[6,8,128], index: 0, kind: input, shape index: {}]
  %s1 = inlined_call_operand.vmem [shape: f32[8,8], index: 1, kind: input, shape index: {}]
  %s2 = inlined_call_operand.vmem [shape: f32[8,1], index: 2, kind: input, shape index: {}]
  %s3 = inlined_call_operand.vmem [shape: f32[3,8,24], index: 3, kind: input, shape index: {}]
  %s4 = inlined_call_operand.vmem [shape: f32[3,8,1], index: 4, kind: input, shape index: {}]
  %s5 = inlined_call_operand.vmem [shape: f32[3,8,24], index: 5, kind: input, shape index: {}]
  %s6 = inlined_call_operand.vmem [shape: f32[3,8,1], index: 6, kind: input, shape index: {}]
  %s7 = inlined_call_operand.vmem [shape: f32[3,8,16], index: 7, kind: input, shape index: {}]
  %s8 = inlined_call_operand.vmem [shape: f32[3,8,1], index: 8, kind: input, shape index: {}]
  %s9 = inlined_call_operand.vmem [shape: f32[8,8], index: 9, kind: input, shape index: {}]
  %s10 = inlined_call_operand.vmem [shape: f32[8,1], index: 10, kind: input, shape index: {}]
  %s11 = inlined_call_operand.vmem [shape: f32[16,8], index: 11, kind: input, shape index: {}]
  %s12 = inlined_call_operand.vmem [shape: f32[16,1], index: 12, kind: input, shape index: {}]
  %s13 = inlined_call_operand.hbm [shape: f32[6,8,128], index: 13, kind: output, shape index: {0}]
  %s14 = inlined_call_operand.hbm [shape: f32[6,16,128], index: 14, kind: output, shape index: {1}]
  %15 = xla_tuple %s13, %s14
  %s16 = sld [smem:[#allocation0]]
  $region93: #{tpu_custom_call.1} parent=0
    _
  %s18 = ssub.s32 1, %s16
  %s19 = scalar_select 0, %s18, %s16
  $region1: #{tpu_custom_call.1} parent=0
    #allocation2 [shape = 'u8[8192]{0}', space=vmem, size = 0x2000, scoped, tag = 'output window, operand 0']
    #allocation3 [shape = 's32[2]{0}', space=sflag, size = 0x8, scoped, tag = 'scoped memory for tpu_custom_call.1']
    #allocation4 [shape = 'u8[16384]{0}', space=vmem, size = 0x4000, scoped, tag = 'output window, operand 1']
    #allocation5 [shape = 's32[2]{0}', space=sflag, size = 0x8, scoped, tag = 'scoped memory for tpu_custom_call.1']
    %20 = vsyncpa [#allocation3], 0
    %s21 = scalar_lea.sflag [#allocation3], 1
    %22 = vsyncpa %s21, 0
    %23 = vsyncpa [#allocation5], 0
    %s24 = scalar_lea.sflag [#allocation5], 1
    %25 = vsyncpa %s24, 0
    loop: start=0, step=1, limit=8
    $region2: #{tpu_custom_call.1} parent=1 // loop_pre_header
      _
    $region3: #{tpu_custom_call.1} parent=1 // loop_header
      %s27 = sphi 0, %s31
      %p28 = scmp.ge.s32.totalorder %s27, 8
      %s37 = sphi 0, %s39
      %s40 = sphi 0, %s37
      %s41 = sphi 0, %s40
      %s57 = sphi 0, %s41
      %s61 = sphi 0, %s61
      %s63 = sphi 0, %s61
      %s64 = sphi 0, %s63
      %s78 = sphi 0, %s64
      %s82 = sphi 0, %s82
      %s84 = sphi 0, %s82
      %s85 = sphi 0, %s84
      %s99 = sphi 0, %s85
      %s103 = sphi 0, %s103
      %s105 = sphi 0, %s103
      %s106 = sphi 0, %s105
      %s120 = sphi 0, %s106
      %s124 = sphi 0, %s124
      %s126 = sphi 0, %s124
      %s127 = sphi 0, %s126
      %s141 = sphi 0, %s127
      %s145 = sphi 0, %s145
      %s147 = sphi 0, %s145
      %s148 = sphi 0, %s147
      %s162 = sphi 0, %s148
      %s166 = sphi 0, %s166
      %s168 = sphi 0, %s166
      %s169 = sphi 0, %s168
      %s183 = sphi 0, %s169
      %s187 = sphi 0, %s187
      %s189 = sphi 0, %s187
      %s190 = sphi 0, %s189
      %s204 = sphi 0, %s190
      %s208 = sphi 0, %s208
      %s210 = sphi 0, %s208
      %s211 = sphi 0, %s210
      %s225 = sphi 0, %s211
      %s229 = sphi 0, %s229
      %s231 = sphi 0, %s229
      %s232 = sphi 0, %s231
      %s246 = sphi 0, %s232
      %s250 = sphi 0, %s250
      %s252 = sphi 0, %s250
      %s253 = sphi 0, %s252
      %s267 = sphi 0, %s253
      %s271 = sphi 0, %s271
      %s273 = sphi 0, %s271
      %s274 = sphi 0, %s273
      %s288 = sphi 0, %s274
      %s292 = sphi 0, %s292
      %s294 = sphi 0, %s292
      %s295 = sphi 0, %s294
      %s309 = sphi 0, %s295
      %s315 = sphi 0, %s317
      %s318 = sphi 0, %s315
      %s319 = sphi 0, %s318
      %s335 = sphi 0, %s319
      %s341 = sphi 0, %s343
      %s344 = sphi 0, %s341
      %s345 = sphi 0, %s344
      %s361 = sphi 0, %s345
    $region4: #{tpu_custom_call.1} parent=1 // loop_header_branch
      %30 = sbr.rel (%p28) target = $region8
    $region5: #{tpu_custom_call.1} parent=1 // loop_body
      %s32 = ssub.s32 %s27, 1
      %s33 = ssub.s32 %s27, 2
      %s34 = sadd.s32 %s27, 1
      %s35 = ssub.s32 %s27, %s34
      %p36 = scmp.eq.s32.totalorder %s35, 0
      %s38 = sadd.s32 %s37, 1
      %s39 = scalar_select %p36, %s37, %s38
      %p42 = pneg %p36
      %p43 = scmp.eq.s32.totalorder %s27, 5
      %p44 = por %p42, %p43
      %p45 = scmp.ne.s32.totalorder %s37, %s40
      %p46 = scmp.eq.s32.totalorder %s27, 0
      %p47 = por %p45, %p46
      %p48 = scmp.ne.s32.totalorder %s37, %s40
      %p49 = scmp.eq.s32.totalorder %s32, 5
      %p50 = por %p48, %p49
      %p51 = scmp.ne.s32.totalorder %s40, %s41
      %p52 = scmp.eq.s32.totalorder %s32, 0
      %p53 = por %p51, %p52
      %p54 = scmp.ne.s32.totalorder %s40, %s41
      %p55 = scmp.eq.s32.totalorder %s33, 5
      %p56 = por %p54, %p55
      %p58 = scmp.ne.s32.totalorder %s41, %s57
      %p59 = scmp.eq.s32.totalorder %s33, 0
      %p60 = por %p58, %p59
      %s62 = sadd.s32 %s61, 1
      %p65 = scmp.eq.s32.totalorder %s27, 5
      %p66 = scmp.ne.s32.totalorder %s61, %s63
      %p67 = scmp.eq.s32.totalorder %s27, 0
      %p68 = por %p66, %p67
      %p69 = scmp.ne.s32.totalorder %s61, %s63
      %p70 = scmp.eq.s32.totalorder %s32, 5
      %p71 = por %p69, %p70
      %p72 = scmp.ne.s32.totalorder %s63, %s64
      %p73 = scmp.eq.s32.totalorder %s32, 0
      %p74 = por %p72, %p73
      %p75 = scmp.ne.s32.totalorder %s63, %s64
      %p76 = scmp.eq.s32.totalorder %s33, 5
      %p77 = por %p75, %p76
      %p79 = scmp.ne.s32.totalorder %s64, %s78
      %p80 = scmp.eq.s32.totalorder %s33, 0
      %p81 = por %p79, %p80
      %s83 = sadd.s32 %s82, 1
      %p86 = scmp.eq.s32.totalorder %s27, 5
      %p87 = scmp.ne.s32.totalorder %s82, %s84
      %p88 = scmp.eq.s32.totalorder %s27, 0
      %p89 = por %p87, %p88
      %p90 = scmp.ne.s32.totalorder %s82, %s84
      %p91 = scmp.eq.s32.totalorder %s32, 5
      %p92 = por %p90, %p91
      %p93 = scmp.ne.s32.totalorder %s84, %s85
      %p94 = scmp.eq.s32.totalorder %s32, 0
      %p95 = por %p93, %p94
      %p96 = scmp.ne.s32.totalorder %s84, %s85
      %p97 = scmp.eq.s32.totalorder %s33, 5
      %p98 = por %p96, %p97
      %p100 = scmp.ne.s32.totalorder %s85, %s99
      %p101 = scmp.eq.s32.totalorder %s33, 0
      %p102 = por %p100, %p101
      %s104 = sadd.s32 %s103, 1
      %p107 = scmp.eq.s32.totalorder %s27, 5
      %p108 = scmp.ne.s32.totalorder %s103, %s105
      %p109 = scmp.eq.s32.totalorder %s27, 0
      %p110 = por %p108, %p109
      %p111 = scmp.ne.s32.totalorder %s103, %s105
      %p112 = scmp.eq.s32.totalorder %s32, 5
      %p113 = por %p111, %p112
      %p114 = scmp.ne.s32.totalorder %s105, %s106
      %p115 = scmp.eq.s32.totalorder %s32, 0
      %p116 = por %p114, %p115
      %p117 = scmp.ne.s32.totalorder %s105, %s106
      %p118 = scmp.eq.s32.totalorder %s33, 5
      %p119 = por %p117, %p118
      %p121 = scmp.ne.s32.totalorder %s106, %s120
      %p122 = scmp.eq.s32.totalorder %s33, 0
      %p123 = por %p121, %p122
      %s125 = sadd.s32 %s124, 1
      %p128 = scmp.eq.s32.totalorder %s27, 5
      %p129 = scmp.ne.s32.totalorder %s124, %s126
      %p130 = scmp.eq.s32.totalorder %s27, 0
      %p131 = por %p129, %p130
      %p132 = scmp.ne.s32.totalorder %s124, %s126
      %p133 = scmp.eq.s32.totalorder %s32, 5
      %p134 = por %p132, %p133
      %p135 = scmp.ne.s32.totalorder %s126, %s127
      %p136 = scmp.eq.s32.totalorder %s32, 0
      %p137 = por %p135, %p136
      %p138 = scmp.ne.s32.totalorder %s126, %s127
      %p139 = scmp.eq.s32.totalorder %s33, 5
      %p140 = por %p138, %p139
      %p142 = scmp.ne.s32.totalorder %s127, %s141
      %p143 = scmp.eq.s32.totalorder %s33, 0
      %p144 = por %p142, %p143
      %s146 = sadd.s32 %s145, 1
      %p149 = scmp.eq.s32.totalorder %s27, 5
      %p150 = scmp.ne.s32.totalorder %s145, %s147
      %p151 = scmp.eq.s32.totalorder %s27, 0
      %p152 = por %p150, %p151
      %p153 = scmp.ne.s32.totalorder %s145, %s147
      %p154 = scmp.eq.s32.totalorder %s32, 5
      %p155 = por %p153, %p154
      %p156 = scmp.ne.s32.totalorder %s147, %s148
      %p157 = scmp.eq.s32.totalorder %s32, 0
      %p158 = por %p156, %p157
      %p159 = scmp.ne.s32.totalorder %s147, %s148
      %p160 = scmp.eq.s32.totalorder %s33, 5
      %p161 = por %p159, %p160
      %p163 = scmp.ne.s32.totalorder %s148, %s162
      %p164 = scmp.eq.s32.totalorder %s33, 0
      %p165 = por %p163, %p164
      %s167 = sadd.s32 %s166, 1
      %p170 = scmp.eq.s32.totalorder %s27, 5
      %p171 = scmp.ne.s32.totalorder %s166, %s168
      %p172 = scmp.eq.s32.totalorder %s27, 0
      %p173 = por %p171, %p172
      %p174 = scmp.ne.s32.totalorder %s166, %s168
      %p175 = scmp.eq.s32.totalorder %s32, 5
      %p176 = por %p174, %p175
      %p177 = scmp.ne.s32.totalorder %s168, %s169
      %p178 = scmp.eq.s32.totalorder %s32, 0
      %p179 = por %p177, %p178
      %p180 = scmp.ne.s32.totalorder %s168, %s169
      %p181 = scmp.eq.s32.totalorder %s33, 5
      %p182 = por %p180, %p181
      %p184 = scmp.ne.s32.totalorder %s169, %s183
      %p185 = scmp.eq.s32.totalorder %s33, 0
      %p186 = por %p184, %p185
      %s188 = sadd.s32 %s187, 1
      %p191 = scmp.eq.s32.totalorder %s27, 5
      %p192 = scmp.ne.s32.totalorder %s187, %s189
      %p193 = scmp.eq.s32.totalorder %s27, 0
      %p194 = por %p192, %p193
      %p195 = scmp.ne.s32.totalorder %s187, %s189
      %p196 = scmp.eq.s32.totalorder %s32, 5
      %p197 = por %p195, %p196
      %p198 = scmp.ne.s32.totalorder %s189, %s190
      %p199 = scmp.eq.s32.totalorder %s32, 0
      %p200 = por %p198, %p199
      %p201 = scmp.ne.s32.totalorder %s189, %s190
      %p202 = scmp.eq.s32.totalorder %s33, 5
      %p203 = por %p201, %p202
      %p205 = scmp.ne.s32.totalorder %s190, %s204
      %p206 = scmp.eq.s32.totalorder %s33, 0
      %p207 = por %p205, %p206
      %s209 = sadd.s32 %s208, 1
      %p212 = scmp.eq.s32.totalorder %s27, 5
      %p213 = scmp.ne.s32.totalorder %s208, %s210
      %p214 = scmp.eq.s32.totalorder %s27, 0
      %p215 = por %p213, %p214
      %p216 = scmp.ne.s32.totalorder %s208, %s210
      %p217 = scmp.eq.s32.totalorder %s32, 5
      %p218 = por %p216, %p217
      %p219 = scmp.ne.s32.totalorder %s210, %s211
      %p220 = scmp.eq.s32.totalorder %s32, 0
      %p221 = por %p219, %p220
      %p222 = scmp.ne.s32.totalorder %s210, %s211
      %p223 = scmp.eq.s32.totalorder %s33, 5
      %p224 = por %p222, %p223
      %p226 = scmp.ne.s32.totalorder %s211, %s225
      %p227 = scmp.eq.s32.totalorder %s33, 0
      %p228 = por %p226, %p227
      %s230 = sadd.s32 %s229, 1
      %p233 = scmp.eq.s32.totalorder %s27, 5
      %p234 = scmp.ne.s32.totalorder %s229, %s231
      %p235 = scmp.eq.s32.totalorder %s27, 0
      %p236 = por %p234, %p235
      %p237 = scmp.ne.s32.totalorder %s229, %s231
      %p238 = scmp.eq.s32.totalorder %s32, 5
      %p239 = por %p237, %p238
      %p240 = scmp.ne.s32.totalorder %s231, %s232
      %p241 = scmp.eq.s32.totalorder %s32, 0
      %p242 = por %p240, %p241
      %p243 = scmp.ne.s32.totalorder %s231, %s232
      %p244 = scmp.eq.s32.totalorder %s33, 5
      %p245 = por %p243, %p244
      %p247 = scmp.ne.s32.totalorder %s232, %s246
      %p248 = scmp.eq.s32.totalorder %s33, 0
      %p249 = por %p247, %p248
      %s251 = sadd.s32 %s250, 1
      %p254 = scmp.eq.s32.totalorder %s27, 5
      %p255 = scmp.ne.s32.totalorder %s250, %s252
      %p256 = scmp.eq.s32.totalorder %s27, 0
      %p257 = por %p255, %p256
      %p258 = scmp.ne.s32.totalorder %s250, %s252
      %p259 = scmp.eq.s32.totalorder %s32, 5
      %p260 = por %p258, %p259
      %p261 = scmp.ne.s32.totalorder %s252, %s253
      %p262 = scmp.eq.s32.totalorder %s32, 0
      %p263 = por %p261, %p262
      %p264 = scmp.ne.s32.totalorder %s252, %s253
      %p265 = scmp.eq.s32.totalorder %s33, 5
      %p266 = por %p264, %p265
      %p268 = scmp.ne.s32.totalorder %s253, %s267
      %p269 = scmp.eq.s32.totalorder %s33, 0
      %p270 = por %p268, %p269
      %s272 = sadd.s32 %s271, 1
      %p275 = scmp.eq.s32.totalorder %s27, 5
      %p276 = scmp.ne.s32.totalorder %s271, %s273
      %p277 = scmp.eq.s32.totalorder %s27, 0
      %p278 = por %p276, %p277
      %p279 = scmp.ne.s32.totalorder %s271, %s273
      %p280 = scmp.eq.s32.totalorder %s32, 5
      %p281 = por %p279, %p280
      %p282 = scmp.ne.s32.totalorder %s273, %s274
      %p283 = scmp.eq.s32.totalorder %s32, 0
      %p284 = por %p282, %p283
      %p285 = scmp.ne.s32.totalorder %s273, %s274
      %p286 = scmp.eq.s32.totalorder %s33, 5
      %p287 = por %p285, %p286
      %p289 = scmp.ne.s32.totalorder %s274, %s288
      %p290 = scmp.eq.s32.totalorder %s33, 0
      %p291 = por %p289, %p290
      %s293 = sadd.s32 %s292, 1
      %p296 = scmp.eq.s32.totalorder %s27, 5
      %p297 = scmp.ne.s32.totalorder %s292, %s294
      %p298 = scmp.eq.s32.totalorder %s27, 0
      %p299 = por %p297, %p298
      %p300 = scmp.ne.s32.totalorder %s292, %s294
      %p301 = scmp.eq.s32.totalorder %s32, 5
      %p302 = por %p300, %p301
      %p303 = scmp.ne.s32.totalorder %s294, %s295
      %p304 = scmp.eq.s32.totalorder %s32, 0
      %p305 = por %p303, %p304
      %p306 = scmp.ne.s32.totalorder %s294, %s295
      %p307 = scmp.eq.s32.totalorder %s33, 5
      %p308 = por %p306, %p307
      %p310 = scmp.ne.s32.totalorder %s295, %s309
      %p311 = scmp.eq.s32.totalorder %s33, 0
      %p312 = por %p310, %p311
      %s313 = ssub.s32 %s27, %s34
      %p314 = scmp.eq.s32.totalorder %s313, 0
      %s316 = sadd.s32 %s315, 1
      %s317 = scalar_select %p314, %s315, %s316
      %p320 = pneg %p314
      %p321 = scmp.eq.s32.totalorder %s27, 5
      %p322 = por %p320, %p321
      %p323 = scmp.ne.s32.totalorder %s315, %s318
      %p324 = scmp.eq.s32.totalorder %s27, 0
      %p325 = por %p323, %p324
      %p326 = scmp.ne.s32.totalorder %s315, %s318
      %p327 = scmp.eq.s32.totalorder %s32, 5
      %p328 = por %p326, %p327
      %p329 = scmp.ne.s32.totalorder %s318, %s319
      %p330 = scmp.eq.s32.totalorder %s32, 0
      %p331 = por %p329, %p330
      %p332 = scmp.ne.s32.totalorder %s318, %s319
      %p333 = scmp.eq.s32.totalorder %s33, 5
      %p334 = por %p332, %p333
      %p336 = scmp.ne.s32.totalorder %s319, %s335
      %p337 = scmp.eq.s32.totalorder %s33, 0
      %p338 = por %p336, %p337
      %s339 = ssub.s32 %s27, %s34
      %p340 = scmp.eq.s32.totalorder %s339, 0
      %s342 = sadd.s32 %s341, 1
      %s343 = scalar_select %p340, %s341, %s342
      %p346 = pneg %p340
      %p347 = scmp.eq.s32.totalorder %s27, 5
      %p348 = por %p346, %p347
      %p349 = scmp.ne.s32.totalorder %s341, %s344
      %p350 = scmp.eq.s32.totalorder %s27, 0
      %p351 = por %p349, %p350
      %p352 = scmp.ne.s32.totalorder %s341, %s344
      %p353 = scmp.eq.s32.totalorder %s32, 5
      %p354 = por %p352, %p353
      %p355 = scmp.ne.s32.totalorder %s344, %s345
      %p356 = scmp.eq.s32.totalorder %s32, 0
      %p357 = por %p355, %p356
      %p358 = scmp.ne.s32.totalorder %s344, %s345
      %p359 = scmp.eq.s32.totalorder %s33, 5
      %p360 = por %p358, %p359
      %p362 = scmp.ne.s32.totalorder %s345, %s361
      %p363 = scmp.eq.s32.totalorder %s33, 0
      %p364 = por %p362, %p363
      %p365 = scmp.le.s32.totalorder 1, %s27
      %p366 = scmp.lt.s32.totalorder %s27, 7
      %p367 = pnand %p365, %p366
      %p368 = pneg %p367
      // Predicated region
      $region9: #{tpu_custom_call.1} parent=5 // pred_check
        _
      $region10: #{tpu_custom_call.1} parent=5 // pred_check_branch
        %370 = sbr.rel (%p367) target = $region12
      $region11: #{tpu_custom_call.1} parent=5 // pred_region
        %s371 = ssub.s32 %s27, 1
        // Predicated region
        $region13: #{tpu_custom_call.1} parent=11 // pred_check
          %p372 = pneg %p74
        $region14: #{tpu_custom_call.1} parent=11 // pred_check_branch
          %374 = sbr.rel (%p372) target = $region16
        $region15: #{tpu_custom_call.1} parent=11 // pred_region
          _
        $region16: #{tpu_custom_call.1} parent=11 // pred_fallthru
          _
        // Predicated region
        $region17: #{tpu_custom_call.1} parent=11 // pred_check
          %p375 = pneg %p95
        $region18: #{tpu_custom_call.1} parent=11 // pred_check_branch
          %377 = sbr.rel (%p375) target = $region20
        $region19: #{tpu_custom_call.1} parent=11 // pred_region
          _
        $region20: #{tpu_custom_call.1} parent=11 // pred_fallthru
          _
        // Predicated region
        $region21: #{tpu_custom_call.1} parent=11 // pred_check
          %p378 = pneg %p116
        $region22: #{tpu_custom_call.1} parent=11 // pred_check_branch
          %380 = sbr.rel (%p378) target = $region24
        $region23: #{tpu_custom_call.1} parent=11 // pred_region
          _
        $region24: #{tpu_custom_call.1} parent=11 // pred_fallthru
          _
        // Predicated region
        $region25: #{tpu_custom_call.1} parent=11 // pred_check
          %p381 = pneg %p137
        $region26: #{tpu_custom_call.1} parent=11 // pred_check_branch
          %383 = sbr.rel (%p381) target = $region28
        $region27: #{tpu_custom_call.1} parent=11 // pred_region
          _
        $region28: #{tpu_custom_call.1} parent=11 // pred_fallthru
          _
        // Predicated region
        $region29: #{tpu_custom_call.1} parent=11 // pred_check
          %p384 = pneg %p158
        $region30: #{tpu_custom_call.1} parent=11 // pred_check_branch
          %386 = sbr.rel (%p384) target = $region32
        $region31: #{tpu_custom_call.1} parent=11 // pred_region
          _
        $region32: #{tpu_custom_call.1} parent=11 // pred_fallthru
          _
        // Predicated region
        $region33: #{tpu_custom_call.1} parent=11 // pred_check
          %p387 = pneg %p179
        $region34: #{tpu_custom_call.1} parent=11 // pred_check_branch
          %389 = sbr.rel (%p387) target = $region36
        $region35: #{tpu_custom_call.1} parent=11 // pred_region
          _
        $region36: #{tpu_custom_call.1} parent=11 // pred_fallthru
          _
        // Predicated region
        $region37: #{tpu_custom_call.1} parent=11 // pred_check
          %p390 = pneg %p200
        $region38: #{tpu_custom_call.1} parent=11 // pred_check_branch
          %392 = sbr.rel (%p390) target = $region40
        $region39: #{tpu_custom_call.1} parent=11 // pred_region
          _
        $region40: #{tpu_custom_call.1} parent=11 // pred_fallthru
          _
        // Predicated region
        $region41: #{tpu_custom_call.1} parent=11 // pred_check
          %p393 = pneg %p221
        $region42: #{tpu_custom_call.1} parent=11 // pred_check_branch
          %395 = sbr.rel (%p393) target = $region44
        $region43: #{tpu_custom_call.1} parent=11 // pred_region
          _
        $region44: #{tpu_custom_call.1} parent=11 // pred_fallthru
          _
        // Predicated region
        $region45: #{tpu_custom_call.1} parent=11 // pred_check
          %p396 = pneg %p242
        $region46: #{tpu_custom_call.1} parent=11 // pred_check_branch
          %398 = sbr.rel (%p396) target = $region48
        $region47: #{tpu_custom_call.1} parent=11 // pred_region
          _
        $region48: #{tpu_custom_call.1} parent=11 // pred_fallthru
          _
        // Predicated region
        $region49: #{tpu_custom_call.1} parent=11 // pred_check
          %p399 = pneg %p263
        $region50: #{tpu_custom_call.1} parent=11 // pred_check_branch
          %401 = sbr.rel (%p399) target = $region52
        $region51: #{tpu_custom_call.1} parent=11 // pred_region
          _
        $region52: #{tpu_custom_call.1} parent=11 // pred_fallthru
          _
        // Predicated region
        $region53: #{tpu_custom_call.1} parent=11 // pred_check
          %p402 = pneg %p284
        $region54: #{tpu_custom_call.1} parent=11 // pred_check_branch
          %404 = sbr.rel (%p402) target = $region56
        $region55: #{tpu_custom_call.1} parent=11 // pred_region
          _
        $region56: #{tpu_custom_call.1} parent=11 // pred_fallthru
          _
        // Predicated region
        $region57: #{tpu_custom_call.1} parent=11 // pred_check
          %p405 = pneg %p305
        $region58: #{tpu_custom_call.1} parent=11 // pred_check_branch
          %407 = sbr.rel (%p405) target = $region60
        $region59: #{tpu_custom_call.1} parent=11 // pred_region
          _
        $region60: #{tpu_custom_call.1} parent=11 // pred_fallthru
          _
      $region12: #{tpu_custom_call.1} parent=5 // pred_fallthru
        _
      %p408 = scmp.lt.s32.totalorder %s27, 6
      // Predicated region
      $region61: #{tpu_custom_call.1} parent=5 // pred_check
        %p409 = pneg %p408
      $region62: #{tpu_custom_call.1} parent=5 // pred_check_branch
        %411 = sbr.rel (%p409) target = $region64
      $region63: #{tpu_custom_call.1} parent=5 // pred_region
        // Predicated region
        $region65: #{tpu_custom_call.1} parent=63 // pred_check
          %p412 = pneg %p47
        $region66: #{tpu_custom_call.1} parent=63 // pred_check_branch
          %414 = sbr.rel (%p412) target = $region68
        $region67: #{tpu_custom_call.1} parent=63 // pred_region
          %p415 = scmp.lt.s32.totalorder %s27, 5
          %s416 = scalar_select %p415, %s27, 5
          %s417 = smul.addr %s416, 8
          %s418 = scalar_lea.vmem %s0, %s417
        $region68: #{tpu_custom_call.1} parent=63 // pred_fallthru
          _
      $region64: #{tpu_custom_call.1} parent=5 // pred_fallthru
        _
      %p419 = scmp.le.s32.totalorder 1, %s27
      %p420 = scmp.lt.s32.totalorder %s27, 7
      %p421 = pnand %p419, %p420
      %p422 = pneg %p421
      // Predicated region
      $region69: #{tpu_custom_call.1} parent=5 // pred_check
        _
      $region70: #{tpu_custom_call.1} parent=5 // pred_check_branch
        %424 = sbr.rel (%p421) target = $region72
      $region71: #{tpu_custom_call.1} parent=5 // pred_region
        %s425 = ssub.s32 %s27, 1
        %p426 = scmp.lt.s32.totalorder %s32, 5
        %s427 = scalar_select %p426, %s32, 5
        %s428 = smul.addr %s427, 8
        %s429 = scalar_lea.vmem %s0, %s428
        %p430 = pneg %p53
        %p431 = pneg %p50
        %p432 = pneg %p74
        %p433 = pneg %p71
        %p434 = pneg %p95
        %p435 = pneg %p92
        %p436 = pneg %p116
        %p437 = pneg %p113
        %p438 = pneg %p137
        %p439 = pneg %p134
        %p440 = pneg %p158
        %p441 = pneg %p155
        %p442 = pneg %p179
        %p443 = pneg %p176
        %p444 = pneg %p200
        %p445 = pneg %p197
        %p446 = pneg %p221
        %p447 = pneg %p218
        %p448 = pneg %p242
        %p449 = pneg %p239
        %p450 = pneg %p263
        %p451 = pneg %p260
        %p452 = pneg %p284
        %p453 = pneg %p281
        %p454 = pneg %p305
        %p455 = pneg %p302
        %p456 = pneg %p331
        %p457 = pneg %p328
        %s458 = sand.u32 %s318, 1
        %s459 = scalar_lea.sflag [#allocation3], %s458
        %s460 = sand.u32 %s318, 1
        %s461 = smul.addr %s460, 8
        %s462 = scalar_lea.vmem [#allocation2], %s461
        %p463 = pneg %p357
        %p464 = pneg %p354
        %s465 = sand.u32 %s344, 1
        %s466 = scalar_lea.sflag [#allocation5], %s465
        %s467 = sand.u32 %s344, 1
        %s468 = smul.addr %s467, 16
        %s469 = scalar_lea.vmem [#allocation4], %s468
        %p470 = scmp.lt.s32.totalorder %s32, 5
        %s471 = scalar_select %p470, %s32, 5
        %s472 = smul.addr %s471, 8
        %s473 = scalar_lea.vmem %s0, %s472
        %v474 = vlaneseq
        %v475 = vand.u32 %v474, 127
        %v476 = vld [vmem:[%s1] sm:$0xff]
        %v477 = vld [vmem:[%s473] sm:$0xff]
        %v478 = vld [vmem:[%s2] sm:$0xff]
        %480 = vset.pattern.permute.xlu0 0
        %481 = vperm.xlu0 %480, %v478
        %v482 = vpop.permute.xlu0 %481
        %vm484 = vcmask 64512
        %v486 = vsel %vm484, %v476, 0
        %488 = vmatprep.subr.mxu0 0.0
        %489 = vmatpush1.msra.mxu0 %v477
        %490 = vmatprep.subr.mxu0 0.0
        %491 = vmatpush1.msra.mxu0 0.0
        %492 = vmatprep.subr.mxu0 0.0
        %493 = vmatpush1.msra.mxu0 0.0
        %494 = vmatprep.subr.mxu0 0.0
        %495 = vmatpush1.msra.mxu0 0.0
        %496 = vmatprep.subr.mxu0 0.0
        %497 = vmatpush1.msra.mxu0 0.0
        %498 = vmatprep.subr.mxu0 0.0
        %499 = vmatpush1.msra.mxu0 0.0
        %500 = vmatprep.subr.mxu0 0.0
        %501 = vmatpush1.msra.mxu0 0.0
        %502 = vmatprep.subr.mxu0 0.0
        %503 = vmatpush1.msra.mxu0 0.0
        %504 = vmatprep.subr.mxu0 0.0
        %505 = vmatpush1.msra.mxu0 0.0
        %506 = vmatprep.subr.mxu0 0.0
        %507 = vmatpush1.msra.mxu0 0.0
        %508 = vmatprep.subr.mxu0 0.0
        %509 = vmatpush1.msra.mxu0 0.0
        %510 = vmatprep.subr.mxu0 0.0
        %511 = vmatpush1.msra.mxu0 0.0
        %512 = vmatprep.subr.mxu0 0.0
        %513 = vmatpush1.msra.mxu0 0.0
        %514 = vmatprep.subr.mxu0 0.0
        %515 = vmatpush1.msra.mxu0 0.0
        %516 = vmatprep.subr.mxu0 0.0
        %517 = vmatpush1.msra.mxu0 0.0
        %518 = vmatprep.subr.mxu0 0.0
        %519 = vmatpush1.msra.mxu0 0.0
        %520 = vmatprep.subr.mxu0 0.0
        %521 = vmatpush1.msra.mxu0 0.0
        %522 = vmatprep.subr.mxu0 0.0
        %523 = vmatpush1.msra.mxu0 0.0
        %524 = vmatprep.subr.mxu0 0.0
        %525 = vmatpush1.msra.mxu0 0.0
        %526 = vmatprep.subr.mxu0 0.0
        %527 = vmatpush1.msra.mxu0 0.0
        %528 = vmatprep.subr.mxu0 0.0
        %529 = vmatpush1.msra.mxu0 0.0
        %530 = vmatprep.subr.mxu0 0.0
        %531 = vmatpush1.msra.mxu0 0.0
        %532 = vmatprep.subr.mxu0 0.0
        %533 = vmatpush1.msra.mxu0 0.0
        %534 = vmatprep.subr.mxu0 0.0
        %535 = vmatpush1.msra.mxu0 0.0
        %536 = vmatprep.subr.mxu0 0.0
        %537 = vmatpush1.msra.mxu0 0.0
        %538 = vmatprep.subr.mxu0 0.0
        %539 = vmatpush1.msra.mxu0 0.0
        %540 = vmatprep.subr.mxu0 0.0
        %541 = vmatpush1.msra.mxu0 0.0
        %542 = vmatprep.subr.mxu0 0.0
        %543 = vmatpush1.msra.mxu0 0.0
        %544 = vmatprep.subr.mxu0 0.0
        %545 = vmatpush1.msra.mxu0 0.0
        %546 = vmatprep.subr.mxu0 0.0
        %547 = vmatpush1.msra.mxu0 0.0
        %548 = vmatprep.subr.mxu0 0.0
        %549 = vmatpush1.msra.mxu0 0.0
        %550 = vmatprep.subr.mxu0 0.0
        %551 = vmatpush1.msra.mxu0 0.0
        %552 = vmatprep.mubr.f32.mxu0 0.0
        %553 = vmatmul.mubr.f32.gmra.mrb[0].mxu0 %v486
        %v554 = vpop.f32.mrb[0].mxu0
        %v555 = vadd.f32 %v482, %v554
        %v556 = vpop.f32.mrb[0].mxu0
        %557 = vdwg.mxu0
        %v558 = vld [vmem:[%s3] sm:$0xff]
        %v559 = vld [vmem:[%s4] sm:$0xff]
        %vm560 = vcmp.ge.s32.totalorder %v475, 4
        %561 = vrot.lane.b32.xlu0 %v555, 4
        %v562 = vpop.permute.xlu0 %561
        %v563 = vsel %vm560, 1, 0
        %vm564 = vcmp.eq.s32.totalorder %v563, 1
        %v565 = vsel %vm564, %v562, 0.0
        %vm566 = vcmp.lt.s32.totalorder %v475, 124
        %567 = vrot.lane.b32.xlu0 %v555, 124
        %v568 = vpop.permute.xlu0 %567
        %v569 = vsel %vm566, 1, 0
        %vm570 = vcmp.eq.s32.totalorder %v569, 1
        %v571 = vsel %vm570, %v568, 0.0
        %573 = vset.pattern.permute.xlu0 0
        %574 = vperm.xlu0 %573, %v559
        %v575 = vpop.permute.xlu0 %574
        %vm577 = vcmask 195584
        %v579 = vsel %vm577, %v558, 0
        %581 = vmatprep.subr.mxu0 0.0
        %582 = vmatpush1.msra.mxu0 %v565
        %583 = vmatprep.subr.mxu0 0.0
        %584 = vmatpush1.msra.mxu0 %v555
        %585 = vmatprep.subr.mxu0 0.0
        %586 = vmatpush1.msra.mxu0 %v571
        %587 = vmatprep.subr.mxu0 0.0
        %588 = vmatpush1.msra.mxu0 0.0
        %589 = vmatprep.subr.mxu0 0.0
        %590 = vmatpush1.msra.mxu0 0.0
        %591 = vmatprep.subr.mxu0 0.0
        %592 = vmatpush1.msra.mxu0 0.0
        %593 = vmatprep.subr.mxu0 0.0
        %594 = vmatpush1.msra.mxu0 0.0
        %595 = vmatprep.subr.mxu0 0.0
        %596 = vmatpush1.msra.mxu0 0.0
        %597 = vmatprep.subr.mxu0 0.0
        %598 = vmatpush1.msra.mxu0 0.0
        %599 = vmatprep.subr.mxu0 0.0
        %600 = vmatpush1.msra.mxu0 0.0
        %601 = vmatprep.subr.mxu0 0.0
        %602 = vmatpush1.msra.mxu0 0.0
        %603 = vmatprep.subr.mxu0 0.0
        %604 = vmatpush1.msra.mxu0 0.0
        %605 = vmatprep.subr.mxu0 0.0
        %606 = vmatpush1.msra.mxu0 0.0
        %607 = vmatprep.subr.mxu0 0.0
        %608 = vmatpush1.msra.mxu0 0.0
        %609 = vmatprep.subr.mxu0 0.0
        %610 = vmatpush1.msra.mxu0 0.0
        %611 = vmatprep.subr.mxu0 0.0
        %612 = vmatpush1.msra.mxu0 0.0
        %613 = vmatprep.subr.mxu0 0.0
        %614 = vmatpush1.msra.mxu0 0.0
        %615 = vmatprep.subr.mxu0 0.0
        %616 = vmatpush1.msra.mxu0 0.0
        %617 = vmatprep.subr.mxu0 0.0
        %618 = vmatpush1.msra.mxu0 0.0
        %619 = vmatprep.subr.mxu0 0.0
        %620 = vmatpush1.msra.mxu0 0.0
        %621 = vmatprep.subr.mxu0 0.0
        %622 = vmatpush1.msra.mxu0 0.0
        %623 = vmatprep.subr.mxu0 0.0
        %624 = vmatpush1.msra.mxu0 0.0
        %625 = vmatprep.subr.mxu0 0.0
        %626 = vmatpush1.msra.mxu0 0.0
        %627 = vmatprep.subr.mxu0 0.0
        %628 = vmatpush1.msra.mxu0 0.0
        %629 = vmatprep.subr.mxu0 0.0
        %630 = vmatpush1.msra.mxu0 0.0
        %631 = vmatprep.subr.mxu0 0.0
        %632 = vmatpush1.msra.mxu0 0.0
        %633 = vmatprep.subr.mxu0 0.0
        %634 = vmatpush1.msra.mxu0 0.0
        %635 = vmatprep.subr.mxu0 0.0
        %636 = vmatpush1.msra.mxu0 0.0
        %637 = vmatprep.subr.mxu0 0.0
        %638 = vmatpush1.msra.mxu0 0.0
        %639 = vmatprep.subr.mxu0 0.0
        %640 = vmatpush1.msra.mxu0 0.0
        %641 = vmatprep.subr.mxu0 0.0
        %642 = vmatpush1.msra.mxu0 0.0
        %643 = vmatprep.subr.mxu0 0.0
        %644 = vmatpush1.msra.mxu0 0.0
        %645 = vmatprep.mubr.f32.mxu0 0.0
        %646 = vmatmul.mubr.f32.gmra.mrb[0].mxu0 %v579
        %v647 = vpop.f32.mrb[0].mxu0
        %v648 = vadd.f32 %v575, %v647
        %v649 = vpop.f32.mrb[0].mxu0
        %650 = vdwg.mxu0
        %v651 = vld [vmem:[%s5] sm:$0xff]
        %v652 = vld [vmem:[%s6] sm:$0xff]
        %vm653 = vcmp.ge.s32.totalorder %v475, 1
        %654 = vrot.lane.b32.xlu0 %v555, 1
        %v655 = vpop.permute.xlu0 %654
        %v656 = vsel %vm653, 1, 0
        %vm657 = vcmp.eq.s32.totalorder %v656, 1
        %v658 = vsel %vm657, %v655, 0.0
        %vm659 = vcmp.lt.s32.totalorder %v475, 127
        %660 = vrot.lane.b32.xlu0 %v555, 127
        %v661 = vpop.permute.xlu0 %660
        %v662 = vsel %vm659, 1, 0
        %vm663 = vcmp.eq.s32.totalorder %v662, 1
        %v664 = vsel %vm663, %v661, 0.0
        %666 = vset.pattern.permute.xlu0 0
        %667 = vperm.xlu0 %666, %v652
        %v668 = vpop.permute.xlu0 %667
        %v671 = vsel %vm577, %v651, 0
        %673 = vmatprep.subr.mxu0 0.0
        %674 = vmatpush1.msra.mxu0 %v658
        %675 = vmatprep.subr.mxu0 0.0
        %676 = vmatpush1.msra.mxu0 %v555
        %677 = vmatprep.subr.mxu0 0.0
        %678 = vmatpush1.msra.mxu0 %v664
        %679 = vmatprep.subr.mxu0 0.0
        %680 = vmatpush1.msra.mxu0 0.0
        %681 = vmatprep.subr.mxu0 0.0
        %682 = vmatpush1.msra.mxu0 0.0
        %683 = vmatprep.subr.mxu0 0.0
        %684 = vmatpush1.msra.mxu0 0.0
        %685 = vmatprep.subr.mxu0 0.0
        %686 = vmatpush1.msra.mxu0 0.0
        %687 = vmatprep.subr.mxu0 0.0
        %688 = vmatpush1.msra.mxu0 0.0
        %689 = vmatprep.subr.mxu0 0.0
        %690 = vmatpush1.msra.mxu0 0.0
        %691 = vmatprep.subr.mxu0 0.0
        %692 = vmatpush1.msra.mxu0 0.0
        %693 = vmatprep.subr.mxu0 0.0
        %694 = vmatpush1.msra.mxu0 0.0
        %695 = vmatprep.subr.mxu0 0.0
        %696 = vmatpush1.msra.mxu0 0.0
        %697 = vmatprep.subr.mxu0 0.0
        %698 = vmatpush1.msra.mxu0 0.0
        %699 = vmatprep.subr.mxu0 0.0
        %700 = vmatpush1.msra.mxu0 0.0
        %701 = vmatprep.subr.mxu0 0.0
        %702 = vmatpush1.msra.mxu0 0.0
        %703 = vmatprep.subr.mxu0 0.0
        %704 = vmatpush1.msra.mxu0 0.0
        %705 = vmatprep.subr.mxu0 0.0
        %706 = vmatpush1.msra.mxu0 0.0
        %707 = vmatprep.subr.mxu0 0.0
        %708 = vmatpush1.msra.mxu0 0.0
        %709 = vmatprep.subr.mxu0 0.0
        %710 = vmatpush1.msra.mxu0 0.0
        %711 = vmatprep.subr.mxu0 0.0
        %712 = vmatpush1.msra.mxu0 0.0
        %713 = vmatprep.subr.mxu0 0.0
        %714 = vmatpush1.msra.mxu0 0.0
        %715 = vmatprep.subr.mxu0 0.0
        %716 = vmatpush1.msra.mxu0 0.0
        %717 = vmatprep.subr.mxu0 0.0
        %718 = vmatpush1.msra.mxu0 0.0
        %719 = vmatprep.subr.mxu0 0.0
        %720 = vmatpush1.msra.mxu0 0.0
        %721 = vmatprep.subr.mxu0 0.0
        %722 = vmatpush1.msra.mxu0 0.0
        %723 = vmatprep.subr.mxu0 0.0
        %724 = vmatpush1.msra.mxu0 0.0
        %725 = vmatprep.subr.mxu0 0.0
        %726 = vmatpush1.msra.mxu0 0.0
        %727 = vmatprep.subr.mxu0 0.0
        %728 = vmatpush1.msra.mxu0 0.0
        %729 = vmatprep.subr.mxu0 0.0
        %730 = vmatpush1.msra.mxu0 0.0
        %731 = vmatprep.subr.mxu0 0.0
        %732 = vmatpush1.msra.mxu0 0.0
        %733 = vmatprep.subr.mxu0 0.0
        %734 = vmatpush1.msra.mxu0 0.0
        %735 = vmatprep.subr.mxu0 0.0
        %736 = vmatpush1.msra.mxu0 0.0
        %737 = vmatprep.mubr.f32.mxu0 0.0
        %738 = vmatmul.mubr.f32.gmra.mrb[0].mxu0 %v671
        %v739 = vpop.f32.mrb[0].mxu0
        %v740 = vadd.f32 %v668, %v739
        %v741 = vpop.f32.mrb[0].mxu0
        %742 = vdwg.mxu0
        %v743 = vld [vmem:[%s7] sm:$0xff]
        %v744 = vld [vmem:[%s8] sm:$0xff]
        %746 = vset.pattern.permute.xlu0 0
        %747 = vperm.xlu0 %746, %v744
        %v748 = vpop.permute.xlu0 %747
        %vm750 = vcmask 130048
        %v752 = vsel %vm750, %v743, 0
        %754 = vmatprep.subr.mxu0 0.0
        %755 = vmatpush1.msra.mxu0 %v648
        %756 = vmatprep.subr.mxu0 0.0
        %757 = vmatpush1.msra.mxu0 %v740
        %758 = vmatprep.subr.mxu0 0.0
        %759 = vmatpush1.msra.mxu0 0.0
        %760 = vmatprep.subr.mxu0 0.0
        %761 = vmatpush1.msra.mxu0 0.0
        %762 = vmatprep.subr.mxu0 0.0
        %763 = vmatpush1.msra.mxu0 0.0
        %764 = vmatprep.subr.mxu0 0.0
        %765 = vmatpush1.msra.mxu0 0.0
        %766 = vmatprep.subr.mxu0 0.0
        %767 = vmatpush1.msra.mxu0 0.0
        %768 = vmatprep.subr.mxu0 0.0
        %769 = vmatpush1.msra.mxu0 0.0
        %770 = vmatprep.subr.mxu0 0.0
        %771 = vmatpush1.msra.mxu0 0.0
        %772 = vmatprep.subr.mxu0 0.0
        %773 = vmatpush1.msra.mxu0 0.0
        %774 = vmatprep.subr.mxu0 0.0
        %775 = vmatpush1.msra.mxu0 0.0
        %776 = vmatprep.subr.mxu0 0.0
        %777 = vmatpush1.msra.mxu0 0.0
        %778 = vmatprep.subr.mxu0 0.0
        %779 = vmatpush1.msra.mxu0 0.0
        %780 = vmatprep.subr.mxu0 0.0
        %781 = vmatpush1.msra.mxu0 0.0
        %782 = vmatprep.subr.mxu0 0.0
        %783 = vmatpush1.msra.mxu0 0.0
        %784 = vmatprep.subr.mxu0 0.0
        %785 = vmatpush1.msra.mxu0 0.0
        %786 = vmatprep.subr.mxu0 0.0
        %787 = vmatpush1.msra.mxu0 0.0
        %788 = vmatprep.subr.mxu0 0.0
        %789 = vmatpush1.msra.mxu0 0.0
        %790 = vmatprep.subr.mxu0 0.0
        %791 = vmatpush1.msra.mxu0 0.0
        %792 = vmatprep.subr.mxu0 0.0
        %793 = vmatpush1.msra.mxu0 0.0
        %794 = vmatprep.subr.mxu0 0.0
        %795 = vmatpush1.msra.mxu0 0.0
        %796 = vmatprep.subr.mxu0 0.0
        %797 = vmatpush1.msra.mxu0 0.0
        %798 = vmatprep.subr.mxu0 0.0
        %799 = vmatpush1.msra.mxu0 0.0
        %800 = vmatprep.subr.mxu0 0.0
        %801 = vmatpush1.msra.mxu0 0.0
        %802 = vmatprep.subr.mxu0 0.0
        %803 = vmatpush1.msra.mxu0 0.0
        %804 = vmatprep.subr.mxu0 0.0
        %805 = vmatpush1.msra.mxu0 0.0
        %806 = vmatprep.subr.mxu0 0.0
        %807 = vmatpush1.msra.mxu0 0.0
        %808 = vmatprep.subr.mxu0 0.0
        %809 = vmatpush1.msra.mxu0 0.0
        %810 = vmatprep.subr.mxu0 0.0
        %811 = vmatpush1.msra.mxu0 0.0
        %812 = vmatprep.subr.mxu0 0.0
        %813 = vmatpush1.msra.mxu0 0.0
        %814 = vmatprep.subr.mxu0 0.0
        %815 = vmatpush1.msra.mxu0 0.0
        %816 = vmatprep.subr.mxu0 0.0
        %817 = vmatpush1.msra.mxu0 0.0
        %818 = vmatprep.mubr.f32.mxu0 0.0
        %819 = vmatmul.mubr.f32.gmra.mrb[0].mxu0 %v752
        %v820 = vpop.f32.mrb[0].mxu0
        %v821 = vadd.f32 %v748, %v820
        %v822 = vpop.f32.mrb[0].mxu0
        %823 = vdwg.mxu0
        %v824 = vmax.f32 %v821, 0.0
        %v825 = vadd.f32 %v824, %v555
        %s826 = scalar_lea.vmem %s3, 8
        %v827 = vld [vmem:[%s826] sm:$0xff]
        %s828 = scalar_lea.vmem %s4, 8
        %v829 = vld [vmem:[%s828] sm:$0xff]
        %vm830 = vcmp.ge.s32.totalorder %v475, 2
        %831 = vrot.lane.b32.xlu0 %v825, 2
        %v832 = vpop.permute.xlu0 %831
        %v833 = vsel %vm830, 1, 0
        %vm834 = vcmp.eq.s32.totalorder %v833, 1
        %v835 = vsel %vm834, %v832, 0.0
        %vm836 = vcmp.lt.s32.totalorder %v475, 126
        %837 = vrot.lane.b32.xlu0 %v825, 126
        %v838 = vpop.permute.xlu0 %837
        %v839 = vsel %vm836, 1, 0
        %vm840 = vcmp.eq.s32.totalorder %v839, 1
        %v841 = vsel %vm840, %v838, 0.0
        %843 = vset.pattern.permute.xlu0 0
        %844 = vperm.xlu0 %843, %v829
        %v845 = vpop.permute.xlu0 %844
        %v848 = vsel %vm577, %v827, 0
        %850 = vmatprep.subr.mxu0 0.0
        %851 = vmatpush1.msra.mxu0 %v835
        %852 = vmatprep.subr.mxu0 0.0
        %853 = vmatpush1.msra.mxu0 %v825
        %854 = vmatprep.subr.mxu0 0.0
        %855 = vmatpush1.msra.mxu0 %v841
        %856 = vmatprep.subr.mxu0 0.0
        %857 = vmatpush1.msra.mxu0 0.0
        %858 = vmatprep.subr.mxu0 0.0
        %859 = vmatpush1.msra.mxu0 0.0
        %860 = vmatprep.subr.mxu0 0.0
        %861 = vmatpush1.msra.mxu0 0.0
        %862 = vmatprep.subr.mxu0 0.0
        %863 = vmatpush1.msra.mxu0 0.0
        %864 = vmatprep.subr.mxu0 0.0
        %865 = vmatpush1.msra.mxu0 0.0
        %866 = vmatprep.subr.mxu0 0.0
        %867 = vmatpush1.msra.mxu0 0.0
        %868 = vmatprep.subr.mxu0 0.0
        %869 = vmatpush1.msra.mxu0 0.0
        %870 = vmatprep.subr.mxu0 0.0
        %871 = vmatpush1.msra.mxu0 0.0
        %872 = vmatprep.subr.mxu0 0.0
        %873 = vmatpush1.msra.mxu0 0.0
        %874 = vmatprep.subr.mxu0 0.0
        %875 = vmatpush1.msra.mxu0 0.0
        %876 = vmatprep.subr.mxu0 0.0
        %877 = vmatpush1.msra.mxu0 0.0
        %878 = vmatprep.subr.mxu0 0.0
        %879 = vmatpush1.msra.mxu0 0.0
        %880 = vmatprep.subr.mxu0 0.0
        %881 = vmatpush1.msra.mxu0 0.0
        %882 = vmatprep.subr.mxu0 0.0
        %883 = vmatpush1.msra.mxu0 0.0
        %884 = vmatprep.subr.mxu0 0.0
        %885 = vmatpush1.msra.mxu0 0.0
        %886 = vmatprep.subr.mxu0 0.0
        %887 = vmatpush1.msra.mxu0 0.0
        %888 = vmatprep.subr.mxu0 0.0
        %889 = vmatpush1.msra.mxu0 0.0
        %890 = vmatprep.subr.mxu0 0.0
        %891 = vmatpush1.msra.mxu0 0.0
        %892 = vmatprep.subr.mxu0 0.0
        %893 = vmatpush1.msra.mxu0 0.0
        %894 = vmatprep.subr.mxu0 0.0
        %895 = vmatpush1.msra.mxu0 0.0
        %896 = vmatprep.subr.mxu0 0.0
        %897 = vmatpush1.msra.mxu0 0.0
        %898 = vmatprep.subr.mxu0 0.0
        %899 = vmatpush1.msra.mxu0 0.0
        %900 = vmatprep.subr.mxu0 0.0
        %901 = vmatpush1.msra.mxu0 0.0
        %902 = vmatprep.subr.mxu0 0.0
        %903 = vmatpush1.msra.mxu0 0.0
        %904 = vmatprep.subr.mxu0 0.0
        %905 = vmatpush1.msra.mxu0 0.0
        %906 = vmatprep.subr.mxu0 0.0
        %907 = vmatpush1.msra.mxu0 0.0
        %908 = vmatprep.subr.mxu0 0.0
        %909 = vmatpush1.msra.mxu0 0.0
        %910 = vmatprep.subr.mxu0 0.0
        %911 = vmatpush1.msra.mxu0 0.0
        %912 = vmatprep.subr.mxu0 0.0
        %913 = vmatpush1.msra.mxu0 0.0
        %914 = vmatprep.mubr.f32.mxu0 0.0
        %915 = vmatmul.mubr.f32.gmra.mrb[0].mxu0 %v848
        %v916 = vpop.f32.mrb[0].mxu0
        %v917 = vadd.f32 %v845, %v916
        %v918 = vpop.f32.mrb[0].mxu0
        %919 = vdwg.mxu0
        %s920 = scalar_lea.vmem %s5, 8
        %v921 = vld [vmem:[%s920] sm:$0xff]
        %s922 = scalar_lea.vmem %s6, 8
        %v923 = vld [vmem:[%s922] sm:$0xff]
        %925 = vset.pattern.permute.xlu0 0
        %926 = vperm.xlu0 %925, %v923
        %v927 = vpop.permute.xlu0 %926
        %v930 = vsel %vm577, %v921, 0
        %932 = vmatprep.subr.mxu0 0.0
        %933 = vmatpush1.msra.mxu0 %v835
        %934 = vmatprep.subr.mxu0 0.0
        %935 = vmatpush1.msra.mxu0 %v825
        %936 = vmatprep.subr.mxu0 0.0
        %937 = vmatpush1.msra.mxu0 %v841
        %938 = vmatprep.subr.mxu0 0.0
        %939 = vmatpush1.msra.mxu0 0.0
        %940 = vmatprep.subr.mxu0 0.0
        %941 = vmatpush1.msra.mxu0 0.0
        %942 = vmatprep.subr.mxu0 0.0
        %943 = vmatpush1.msra.mxu0 0.0
        %944 = vmatprep.subr.mxu0 0.0
        %945 = vmatpush1.msra.mxu0 0.0
        %946 = vmatprep.subr.mxu0 0.0
        %947 = vmatpush1.msra.mxu0 0.0
        %948 = vmatprep.subr.mxu0 0.0
        %949 = vmatpush1.msra.mxu0 0.0
        %950 = vmatprep.subr.mxu0 0.0
        %951 = vmatpush1.msra.mxu0 0.0
        %952 = vmatprep.subr.mxu0 0.0
        %953 = vmatpush1.msra.mxu0 0.0
        %954 = vmatprep.subr.mxu0 0.0
        %955 = vmatpush1.msra.mxu0 0.0
        %956 = vmatprep.subr.mxu0 0.0
        %957 = vmatpush1.msra.mxu0 0.0
        %958 = vmatprep.subr.mxu0 0.0
        %959 = vmatpush1.msra.mxu0 0.0
        %960 = vmatprep.subr.mxu0 0.0
        %961 = vmatpush1.msra.mxu0 0.0
        %962 = vmatprep.subr.mxu0 0.0
        %963 = vmatpush1.msra.mxu0 0.0
        %964 = vmatprep.subr.mxu0 0.0
        %965 = vmatpush1.msra.mxu0 0.0
        %966 = vmatprep.subr.mxu0 0.0
        %967 = vmatpush1.msra.mxu0 0.0
        %968 = vmatprep.subr.mxu0 0.0
        %969 = vmatpush1.msra.mxu0 0.0
        %970 = vmatprep.subr.mxu0 0.0
        %971 = vmatpush1.msra.mxu0 0.0
        %972 = vmatprep.subr.mxu0 0.0
        %973 = vmatpush1.msra.mxu0 0.0
        %974 = vmatprep.subr.mxu0 0.0
        %975 = vmatpush1.msra.mxu0 0.0
        %976 = vmatprep.subr.mxu0 0.0
        %977 = vmatpush1.msra.mxu0 0.0
        %978 = vmatprep.subr.mxu0 0.0
        %979 = vmatpush1.msra.mxu0 0.0
        %980 = vmatprep.subr.mxu0 0.0
        %981 = vmatpush1.msra.mxu0 0.0
        %982 = vmatprep.subr.mxu0 0.0
        %983 = vmatpush1.msra.mxu0 0.0
        %984 = vmatprep.subr.mxu0 0.0
        %985 = vmatpush1.msra.mxu0 0.0
        %986 = vmatprep.subr.mxu0 0.0
        %987 = vmatpush1.msra.mxu0 0.0
        %988 = vmatprep.subr.mxu0 0.0
        %989 = vmatpush1.msra.mxu0 0.0
        %990 = vmatprep.subr.mxu0 0.0
        %991 = vmatpush1.msra.mxu0 0.0
        %992 = vmatprep.subr.mxu0 0.0
        %993 = vmatpush1.msra.mxu0 0.0
        %994 = vmatprep.subr.mxu0 0.0
        %995 = vmatpush1.msra.mxu0 0.0
        %996 = vmatprep.mubr.f32.mxu0 0.0
        %997 = vmatmul.mubr.f32.gmra.mrb[0].mxu0 %v930
        %v998 = vpop.f32.mrb[0].mxu0
        %v999 = vadd.f32 %v927, %v998
        %v1000 = vpop.f32.mrb[0].mxu0
        %1001 = vdwg.mxu0
        %s1002 = scalar_lea.vmem %s7, 8
        %v1003 = vld [vmem:[%s1002] sm:$0xff]
        %s1004 = scalar_lea.vmem %s8, 8
        %v1005 = vld [vmem:[%s1004] sm:$0xff]
        %1007 = vset.pattern.permute.xlu0 0
        %1008 = vperm.xlu0 %1007, %v1005
        %v1009 = vpop.permute.xlu0 %1008
        %v1012 = vsel %vm750, %v1003, 0
        %1014 = vmatprep.subr.mxu0 0.0
        %1015 = vmatpush1.msra.mxu0 %v917
        %1016 = vmatprep.subr.mxu0 0.0
        %1017 = vmatpush1.msra.mxu0 %v999
        %1018 = vmatprep.subr.mxu0 0.0
        %1019 = vmatpush1.msra.mxu0 0.0
        %1020 = vmatprep.subr.mxu0 0.0
        %1021 = vmatpush1.msra.mxu0 0.0
        %1022 = vmatprep.subr.mxu0 0.0
        %1023 = vmatpush1.msra.mxu0 0.0
        %1024 = vmatprep.subr.mxu0 0.0
        %1025 = vmatpush1.msra.mxu0 0.0
        %1026 = vmatprep.subr.mxu0 0.0
        %1027 = vmatpush1.msra.mxu0 0.0
        %1028 = vmatprep.subr.mxu0 0.0
        %1029 = vmatpush1.msra.mxu0 0.0
        %1030 = vmatprep.subr.mxu0 0.0
        %1031 = vmatpush1.msra.mxu0 0.0
        %1032 = vmatprep.subr.mxu0 0.0
        %1033 = vmatpush1.msra.mxu0 0.0
        %1034 = vmatprep.subr.mxu0 0.0
        %1035 = vmatpush1.msra.mxu0 0.0
        %1036 = vmatprep.subr.mxu0 0.0
        %1037 = vmatpush1.msra.mxu0 0.0
        %1038 = vmatprep.subr.mxu0 0.0
        %1039 = vmatpush1.msra.mxu0 0.0
        %1040 = vmatprep.subr.mxu0 0.0
        %1041 = vmatpush1.msra.mxu0 0.0
        %1042 = vmatprep.subr.mxu0 0.0
        %1043 = vmatpush1.msra.mxu0 0.0
        %1044 = vmatprep.subr.mxu0 0.0
        %1045 = vmatpush1.msra.mxu0 0.0
        %1046 = vmatprep.subr.mxu0 0.0
        %1047 = vmatpush1.msra.mxu0 0.0
        %1048 = vmatprep.subr.mxu0 0.0
        %1049 = vmatpush1.msra.mxu0 0.0
        %1050 = vmatprep.subr.mxu0 0.0
        %1051 = vmatpush1.msra.mxu0 0.0
        %1052 = vmatprep.subr.mxu0 0.0
        %1053 = vmatpush1.msra.mxu0 0.0
        %1054 = vmatprep.subr.mxu0 0.0
        %1055 = vmatpush1.msra.mxu0 0.0
        %1056 = vmatprep.subr.mxu0 0.0
        %1057 = vmatpush1.msra.mxu0 0.0
        %1058 = vmatprep.subr.mxu0 0.0
        %1059 = vmatpush1.msra.mxu0 0.0
        %1060 = vmatprep.subr.mxu0 0.0
        %1061 = vmatpush1.msra.mxu0 0.0
        %1062 = vmatprep.subr.mxu0 0.0
        %1063 = vmatpush1.msra.mxu0 0.0
        %1064 = vmatprep.subr.mxu0 0.0
        %1065 = vmatpush1.msra.mxu0 0.0
        %1066 = vmatprep.subr.mxu0 0.0
        %1067 = vmatpush1.msra.mxu0 0.0
        %1068 = vmatprep.subr.mxu0 0.0
        %1069 = vmatpush1.msra.mxu0 0.0
        %1070 = vmatprep.subr.mxu0 0.0
        %1071 = vmatpush1.msra.mxu0 0.0
        %1072 = vmatprep.subr.mxu0 0.0
        %1073 = vmatpush1.msra.mxu0 0.0
        %1074 = vmatprep.subr.mxu0 0.0
        %1075 = vmatpush1.msra.mxu0 0.0
        %1076 = vmatprep.subr.mxu0 0.0
        %1077 = vmatpush1.msra.mxu0 0.0
        %1078 = vmatprep.mubr.f32.mxu0 0.0
        %1079 = vmatmul.mubr.f32.gmra.mrb[0].mxu0 %v1012
        %v1080 = vpop.f32.mrb[0].mxu0
        %v1081 = vadd.f32 %v1009, %v1080
        %v1082 = vpop.f32.mrb[0].mxu0
        %1083 = vdwg.mxu0
        %v1084 = vmax.f32 %v1081, 0.0
        %v1085 = vadd.f32 %v1084, %v825
        %s1086 = scalar_lea.vmem %s3, 16
        %v1087 = vld [vmem:[%s1086] sm:$0xff]
        %s1088 = scalar_lea.vmem %s4, 16
        %v1089 = vld [vmem:[%s1088] sm:$0xff]
        %1090 = vrot.lane.b32.xlu0 %v1085, 1
        %v1091 = vpop.permute.xlu0 %1090
        %v1092 = vsel %vm657, %v1091, 0.0
        %1093 = vrot.lane.b32.xlu0 %v1085, 127
        %v1094 = vpop.permute.xlu0 %1093
        %v1095 = vsel %vm663, %v1094, 0.0
        %1097 = vset.pattern.permute.xlu0 0
        %1098 = vperm.xlu0 %1097, %v1089
        %v1099 = vpop.permute.xlu0 %1098
        %v1102 = vsel %vm577, %v1087, 0
        %1104 = vmatprep.subr.mxu0 0.0
        %1105 = vmatpush1.msra.mxu0 %v1092
        %1106 = vmatprep.subr.mxu0 0.0
        %1107 = vmatpush1.msra.mxu0 %v1085
        %1108 = vmatprep.subr.mxu0 0.0
        %1109 = vmatpush1.msra.mxu0 %v1095
        %1110 = vmatprep.subr.mxu0 0.0
        %1111 = vmatpush1.msra.mxu0 0.0
        %1112 = vmatprep.subr.mxu0 0.0
        %1113 = vmatpush1.msra.mxu0 0.0
        %1114 = vmatprep.subr.mxu0 0.0
        %1115 = vmatpush1.msra.mxu0 0.0
        %1116 = vmatprep.subr.mxu0 0.0
        %1117 = vmatpush1.msra.mxu0 0.0
        %1118 = vmatprep.subr.mxu0 0.0
        %1119 = vmatpush1.msra.mxu0 0.0
        %1120 = vmatprep.subr.mxu0 0.0
        %1121 = vmatpush1.msra.mxu0 0.0
        %1122 = vmatprep.subr.mxu0 0.0
        %1123 = vmatpush1.msra.mxu0 0.0
        %1124 = vmatprep.subr.mxu0 0.0
        %1125 = vmatpush1.msra.mxu0 0.0
        %1126 = vmatprep.subr.mxu0 0.0
        %1127 = vmatpush1.msra.mxu0 0.0
        %1128 = vmatprep.subr.mxu0 0.0
        %1129 = vmatpush1.msra.mxu0 0.0
        %1130 = vmatprep.subr.mxu0 0.0
        %1131 = vmatpush1.msra.mxu0 0.0
        %1132 = vmatprep.subr.mxu0 0.0
        %1133 = vmatpush1.msra.mxu0 0.0
        %1134 = vmatprep.subr.mxu0 0.0
        %1135 = vmatpush1.msra.mxu0 0.0
        %1136 = vmatprep.subr.mxu0 0.0
        %1137 = vmatpush1.msra.mxu0 0.0
        %1138 = vmatprep.subr.mxu0 0.0
        %1139 = vmatpush1.msra.mxu0 0.0
        %1140 = vmatprep.subr.mxu0 0.0
        %1141 = vmatpush1.msra.mxu0 0.0
        %1142 = vmatprep.subr.mxu0 0.0
        %1143 = vmatpush1.msra.mxu0 0.0
        %1144 = vmatprep.subr.mxu0 0.0
        %1145 = vmatpush1.msra.mxu0 0.0
        %1146 = vmatprep.subr.mxu0 0.0
        %1147 = vmatpush1.msra.mxu0 0.0
        %1148 = vmatprep.subr.mxu0 0.0
        %1149 = vmatpush1.msra.mxu0 0.0
        %1150 = vmatprep.subr.mxu0 0.0
        %1151 = vmatpush1.msra.mxu0 0.0
        %1152 = vmatprep.subr.mxu0 0.0
        %1153 = vmatpush1.msra.mxu0 0.0
        %1154 = vmatprep.subr.mxu0 0.0
        %1155 = vmatpush1.msra.mxu0 0.0
        %1156 = vmatprep.subr.mxu0 0.0
        %1157 = vmatpush1.msra.mxu0 0.0
        %1158 = vmatprep.subr.mxu0 0.0
        %1159 = vmatpush1.msra.mxu0 0.0
        %1160 = vmatprep.subr.mxu0 0.0
        %1161 = vmatpush1.msra.mxu0 0.0
        %1162 = vmatprep.subr.mxu0 0.0
        %1163 = vmatpush1.msra.mxu0 0.0
        %1164 = vmatprep.subr.mxu0 0.0
        %1165 = vmatpush1.msra.mxu0 0.0
        %1166 = vmatprep.subr.mxu0 0.0
        %1167 = vmatpush1.msra.mxu0 0.0
        %1168 = vmatprep.mubr.f32.mxu0 0.0
        %1169 = vmatmul.mubr.f32.gmra.mrb[0].mxu0 %v1102
        %v1170 = vpop.f32.mrb[0].mxu0
        %v1171 = vadd.f32 %v1099, %v1170
        %v1172 = vpop.f32.mrb[0].mxu0
        %1173 = vdwg.mxu0
        %s1174 = scalar_lea.vmem %s5, 16
        %v1175 = vld [vmem:[%s1174] sm:$0xff]
        %s1176 = scalar_lea.vmem %s6, 16
        %v1177 = vld [vmem:[%s1176] sm:$0xff]
        %1178 = vrot.lane.b32.xlu0 %v1085, 4
        %v1179 = vpop.permute.xlu0 %1178
        %v1180 = vsel %vm564, %v1179, 0.0
        %1181 = vrot.lane.b32.xlu0 %v1085, 124
        %v1182 = vpop.permute.xlu0 %1181
        %v1183 = vsel %vm570, %v1182, 0.0
        %1185 = vset.pattern.permute.xlu0 0
        %1186 = vperm.xlu0 %1185, %v1177
        %v1187 = vpop.permute.xlu0 %1186
        %v1190 = vsel %vm577, %v1175, 0
        %1192 = vmatprep.subr.mxu0 0.0
        %1193 = vmatpush1.msra.mxu0 %v1180
        %1194 = vmatprep.subr.mxu0 0.0
        %1195 = vmatpush1.msra.mxu0 %v1085
        %1196 = vmatprep.subr.mxu0 0.0
        %1197 = vmatpush1.msra.mxu0 %v1183
        %1198 = vmatprep.subr.mxu0 0.0
        %1199 = vmatpush1.msra.mxu0 0.0
        %1200 = vmatprep.subr.mxu0 0.0
        %1201 = vmatpush1.msra.mxu0 0.0
        %1202 = vmatprep.subr.mxu0 0.0
        %1203 = vmatpush1.msra.mxu0 0.0
        %1204 = vmatprep.subr.mxu0 0.0
        %1205 = vmatpush1.msra.mxu0 0.0
        %1206 = vmatprep.subr.mxu0 0.0
        %1207 = vmatpush1.msra.mxu0 0.0
        %1208 = vmatprep.subr.mxu0 0.0
        %1209 = vmatpush1.msra.mxu0 0.0
        %1210 = vmatprep.subr.mxu0 0.0
        %1211 = vmatpush1.msra.mxu0 0.0
        %1212 = vmatprep.subr.mxu0 0.0
        %1213 = vmatpush1.msra.mxu0 0.0
        %1214 = vmatprep.subr.mxu0 0.0
        %1215 = vmatpush1.msra.mxu0 0.0
        %1216 = vmatprep.subr.mxu0 0.0
        %1217 = vmatpush1.msra.mxu0 0.0
        %1218 = vmatprep.subr.mxu0 0.0
        %1219 = vmatpush1.msra.mxu0 0.0
        %1220 = vmatprep.subr.mxu0 0.0
        %1221 = vmatpush1.msra.mxu0 0.0
        %1222 = vmatprep.subr.mxu0 0.0
        %1223 = vmatpush1.msra.mxu0 0.0
        %1224 = vmatprep.subr.mxu0 0.0
        %1225 = vmatpush1.msra.mxu0 0.0
        %1226 = vmatprep.subr.mxu0 0.0
        %1227 = vmatpush1.msra.mxu0 0.0
        %1228 = vmatprep.subr.mxu0 0.0
        %1229 = vmatpush1.msra.mxu0 0.0
        %1230 = vmatprep.subr.mxu0 0.0
        %1231 = vmatpush1.msra.mxu0 0.0
        %1232 = vmatprep.subr.mxu0 0.0
        %1233 = vmatpush1.msra.mxu0 0.0
        %1234 = vmatprep.subr.mxu0 0.0
        %1235 = vmatpush1.msra.mxu0 0.0
        %1236 = vmatprep.subr.mxu0 0.0
        %1237 = vmatpush1.msra.mxu0 0.0
        %1238 = vmatprep.subr.mxu0 0.0
        %1239 = vmatpush1.msra.mxu0 0.0
        %1240 = vmatprep.subr.mxu0 0.0
        %1241 = vmatpush1.msra.mxu0 0.0
        %1242 = vmatprep.subr.mxu0 0.0
        %1243 = vmatpush1.msra.mxu0 0.0
        %1244 = vmatprep.subr.mxu0 0.0
        %1245 = vmatpush1.msra.mxu0 0.0
        %1246 = vmatprep.subr.mxu0 0.0
        %1247 = vmatpush1.msra.mxu0 0.0
        %1248 = vmatprep.subr.mxu0 0.0
        %1249 = vmatpush1.msra.mxu0 0.0
        %1250 = vmatprep.subr.mxu0 0.0
        %1251 = vmatpush1.msra.mxu0 0.0
        %1252 = vmatprep.subr.mxu0 0.0
        %1253 = vmatpush1.msra.mxu0 0.0
        %1254 = vmatprep.subr.mxu0 0.0
        %1255 = vmatpush1.msra.mxu0 0.0
        %1256 = vmatprep.mubr.f32.mxu0 0.0
        %1257 = vmatmul.mubr.f32.gmra.mrb[0].mxu0 %v1190
        %v1258 = vpop.f32.mrb[0].mxu0
        %v1259 = vadd.f32 %v1187, %v1258
        %v1260 = vpop.f32.mrb[0].mxu0
        %1261 = vdwg.mxu0
        %s1262 = scalar_lea.vmem %s7, 16
        %v1263 = vld [vmem:[%s1262] sm:$0xff]
        %s1264 = scalar_lea.vmem %s8, 16
        %v1265 = vld [vmem:[%s1264] sm:$0xff]
        %1267 = vset.pattern.permute.xlu0 0
        %1268 = vperm.xlu0 %1267, %v1265
        %v1269 = vpop.permute.xlu0 %1268
        %v1272 = vsel %vm750, %v1263, 0
        %1274 = vmatprep.subr.mxu0 0.0
        %1275 = vmatpush1.msra.mxu0 %v1171
        %1276 = vmatprep.subr.mxu0 0.0
        %1277 = vmatpush1.msra.mxu0 %v1259
        %1278 = vmatprep.subr.mxu0 0.0
        %1279 = vmatpush1.msra.mxu0 0.0
        %1280 = vmatprep.subr.mxu0 0.0
        %1281 = vmatpush1.msra.mxu0 0.0
        %1282 = vmatprep.subr.mxu0 0.0
        %1283 = vmatpush1.msra.mxu0 0.0
        %1284 = vmatprep.subr.mxu0 0.0
        %1285 = vmatpush1.msra.mxu0 0.0
        %1286 = vmatprep.subr.mxu0 0.0
        %1287 = vmatpush1.msra.mxu0 0.0
        %1288 = vmatprep.subr.mxu0 0.0
        %1289 = vmatpush1.msra.mxu0 0.0
        %1290 = vmatprep.subr.mxu0 0.0
        %1291 = vmatpush1.msra.mxu0 0.0
        %1292 = vmatprep.subr.mxu0 0.0
        %1293 = vmatpush1.msra.mxu0 0.0
        %1294 = vmatprep.subr.mxu0 0.0
        %1295 = vmatpush1.msra.mxu0 0.0
        %1296 = vmatprep.subr.mxu0 0.0
        %1297 = vmatpush1.msra.mxu0 0.0
        %1298 = vmatprep.subr.mxu0 0.0
        %1299 = vmatpush1.msra.mxu0 0.0
        %1300 = vmatprep.subr.mxu0 0.0
        %1301 = vmatpush1.msra.mxu0 0.0
        %1302 = vmatprep.subr.mxu0 0.0
        %1303 = vmatpush1.msra.mxu0 0.0
        %1304 = vmatprep.subr.mxu0 0.0
        %1305 = vmatpush1.msra.mxu0 0.0
        %1306 = vmatprep.subr.mxu0 0.0
        %1307 = vmatpush1.msra.mxu0 0.0
        %1308 = vmatprep.subr.mxu0 0.0
        %1309 = vmatpush1.msra.mxu0 0.0
        %1310 = vmatprep.subr.mxu0 0.0
        %1311 = vmatpush1.msra.mxu0 0.0
        %1312 = vmatprep.subr.mxu0 0.0
        %1313 = vmatpush1.msra.mxu0 0.0
        %1314 = vmatprep.subr.mxu0 0.0
        %1315 = vmatpush1.msra.mxu0 0.0
        %1316 = vmatprep.subr.mxu0 0.0
        %1317 = vmatpush1.msra.mxu0 0.0
        %1318 = vmatprep.subr.mxu0 0.0
        %1319 = vmatpush1.msra.mxu0 0.0
        %1320 = vmatprep.subr.mxu0 0.0
        %1321 = vmatpush1.msra.mxu0 0.0
        %1322 = vmatprep.subr.mxu0 0.0
        %1323 = vmatpush1.msra.mxu0 0.0
        %1324 = vmatprep.subr.mxu0 0.0
        %1325 = vmatpush1.msra.mxu0 0.0
        %1326 = vmatprep.subr.mxu0 0.0
        %1327 = vmatpush1.msra.mxu0 0.0
        %1328 = vmatprep.subr.mxu0 0.0
        %1329 = vmatpush1.msra.mxu0 0.0
        %1330 = vmatprep.subr.mxu0 0.0
        %1331 = vmatpush1.msra.mxu0 0.0
        %1332 = vmatprep.subr.mxu0 0.0
        %1333 = vmatpush1.msra.mxu0 0.0
        %1334 = vmatprep.subr.mxu0 0.0
        %1335 = vmatpush1.msra.mxu0 0.0
        %1336 = vmatprep.subr.mxu0 0.0
        %1337 = vmatpush1.msra.mxu0 0.0
        %1338 = vmatprep.mubr.f32.mxu0 0.0
        %1339 = vmatmul.mubr.f32.gmra.mrb[0].mxu0 %v1272
        %v1340 = vpop.f32.mrb[0].mxu0
        %v1341 = vadd.f32 %v1269, %v1340
        %v1342 = vpop.f32.mrb[0].mxu0
        %1343 = vdwg.mxu0
        %v1344 = vmax.f32 %v1341, 0.0
        %v1345 = vadd.f32 %v1344, %v1085
        %v1346 = vld [vmem:[%s9] sm:$0xff]
        %v1347 = vld [vmem:[%s10] sm:$0xff]
        %1349 = vset.pattern.permute.xlu0 0
        %1350 = vperm.xlu0 %1349, %v1347
        %v1351 = vpop.permute.xlu0 %1350
        %v1354 = vsel %vm484, %v1346, 0
        %1356 = vmatprep.subr.mxu0 0.0
        %1357 = vmatpush1.msra.mxu0 %v1345
        %1358 = vmatprep.subr.mxu0 0.0
        %1359 = vmatpush1.msra.mxu0 0.0
        %1360 = vmatprep.subr.mxu0 0.0
        %1361 = vmatpush1.msra.mxu0 0.0
        %1362 = vmatprep.subr.mxu0 0.0
        %1363 = vmatpush1.msra.mxu0 0.0
        %1364 = vmatprep.subr.mxu0 0.0
        %1365 = vmatpush1.msra.mxu0 0.0
        %1366 = vmatprep.subr.mxu0 0.0
        %1367 = vmatpush1.msra.mxu0 0.0
        %1368 = vmatprep.subr.mxu0 0.0
        %1369 = vmatpush1.msra.mxu0 0.0
        %1370 = vmatprep.subr.mxu0 0.0
        %1371 = vmatpush1.msra.mxu0 0.0
        %1372 = vmatprep.subr.mxu0 0.0
        %1373 = vmatpush1.msra.mxu0 0.0
        %1374 = vmatprep.subr.mxu0 0.0
        %1375 = vmatpush1.msra.mxu0 0.0
        %1376 = vmatprep.subr.mxu0 0.0
        %1377 = vmatpush1.msra.mxu0 0.0
        %1378 = vmatprep.subr.mxu0 0.0
        %1379 = vmatpush1.msra.mxu0 0.0
        %1380 = vmatprep.subr.mxu0 0.0
        %1381 = vmatpush1.msra.mxu0 0.0
        %1382 = vmatprep.subr.mxu0 0.0
        %1383 = vmatpush1.msra.mxu0 0.0
        %1384 = vmatprep.subr.mxu0 0.0
        %1385 = vmatpush1.msra.mxu0 0.0
        %1386 = vmatprep.subr.mxu0 0.0
        %1387 = vmatpush1.msra.mxu0 0.0
        %1388 = vmatprep.subr.mxu0 0.0
        %1389 = vmatpush1.msra.mxu0 0.0
        %1390 = vmatprep.subr.mxu0 0.0
        %1391 = vmatpush1.msra.mxu0 0.0
        %1392 = vmatprep.subr.mxu0 0.0
        %1393 = vmatpush1.msra.mxu0 0.0
        %1394 = vmatprep.subr.mxu0 0.0
        %1395 = vmatpush1.msra.mxu0 0.0
        %1396 = vmatprep.subr.mxu0 0.0
        %1397 = vmatpush1.msra.mxu0 0.0
        %1398 = vmatprep.subr.mxu0 0.0
        %1399 = vmatpush1.msra.mxu0 0.0
        %1400 = vmatprep.subr.mxu0 0.0
        %1401 = vmatpush1.msra.mxu0 0.0
        %1402 = vmatprep.subr.mxu0 0.0
        %1403 = vmatpush1.msra.mxu0 0.0
        %1404 = vmatprep.subr.mxu0 0.0
        %1405 = vmatpush1.msra.mxu0 0.0
        %1406 = vmatprep.subr.mxu0 0.0
        %1407 = vmatpush1.msra.mxu0 0.0
        %1408 = vmatprep.subr.mxu0 0.0
        %1409 = vmatpush1.msra.mxu0 0.0
        %1410 = vmatprep.subr.mxu0 0.0
        %1411 = vmatpush1.msra.mxu0 0.0
        %1412 = vmatprep.subr.mxu0 0.0
        %1413 = vmatpush1.msra.mxu0 0.0
        %1414 = vmatprep.subr.mxu0 0.0
        %1415 = vmatpush1.msra.mxu0 0.0
        %1416 = vmatprep.subr.mxu0 0.0
        %1417 = vmatpush1.msra.mxu0 0.0
        %1418 = vmatprep.subr.mxu0 0.0
        %1419 = vmatpush1.msra.mxu0 0.0
        %1420 = vmatprep.mubr.f32.mxu0 0.0
        %1421 = vmatmul.mubr.f32.gmra.mrb[0].mxu0 %v1354
        %v1422 = vpop.f32.mrb[0].mxu0
        %v1423 = vadd.f32 %v1351, %v1422
        %v1424 = vpop.f32.mrb[0].mxu0
        %1425 = vdwg.mxu0
        %1426 = vst [vmem:[%s462] sm:$0xff] %v1423
        %v1427 = vld [vmem:[%s11] sm:$0xff]
        %v1428 = vld [vmem:[%s11 + $0x8] sm:$0xff]
        %v1429 = vld [vmem:[%s12] sm:$0xff]
        %v1430 = vld [vmem:[%s12 + $0x8] sm:$0xff]
        %1432 = vset.pattern.permute.xlu0 0
        %1433 = vperm.xlu0 %1432, %v1429
        %v1434 = vpop.permute.xlu0 %1433
        %1437 = vset.pattern.permute.xlu0 0
        %1438 = vperm.xlu0 %1437, %v1430
        %v1439 = vpop.permute.xlu0 %1438
        %v1442 = vsel %vm484, %v1427, 0
        %v1445 = vsel %vm484, %v1428, 0
        %1447 = vmatprep.subr.mxu0 0.0
        %1448 = vmatpush1.msra.mxu0 %v1345
        %1449 = vmatprep.subr.mxu0 0.0
        %1450 = vmatpush1.msra.mxu0 0.0
        %1451 = vmatprep.subr.mxu0 0.0
        %1452 = vmatpush1.msra.mxu0 0.0
        %1453 = vmatprep.subr.mxu0 0.0
        %1454 = vmatpush1.msra.mxu0 0.0
        %1455 = vmatprep.subr.mxu0 0.0
        %1456 = vmatpush1.msra.mxu0 0.0
        %1457 = vmatprep.subr.mxu0 0.0
        %1458 = vmatpush1.msra.mxu0 0.0
        %1459 = vmatprep.subr.mxu0 0.0
        %1460 = vmatpush1.msra.mxu0 0.0
        %1461 = vmatprep.subr.mxu0 0.0
        %1462 = vmatpush1.msra.mxu0 0.0
        %1463 = vmatprep.subr.mxu0 0.0
        %1464 = vmatpush1.msra.mxu0 0.0
        %1465 = vmatprep.subr.mxu0 0.0
        %1466 = vmatpush1.msra.mxu0 0.0
        %1467 = vmatprep.subr.mxu0 0.0
        %1468 = vmatpush1.msra.mxu0 0.0
        %1469 = vmatprep.subr.mxu0 0.0
        %1470 = vmatpush1.msra.mxu0 0.0
        %1471 = vmatprep.subr.mxu0 0.0
        %1472 = vmatpush1.msra.mxu0 0.0
        %1473 = vmatprep.subr.mxu0 0.0
        %1474 = vmatpush1.msra.mxu0 0.0
        %1475 = vmatprep.subr.mxu0 0.0
        %1476 = vmatpush1.msra.mxu0 0.0
        %1477 = vmatprep.subr.mxu0 0.0
        %1478 = vmatpush1.msra.mxu0 0.0
        %1479 = vmatprep.subr.mxu0 0.0
        %1480 = vmatpush1.msra.mxu0 0.0
        %1481 = vmatprep.subr.mxu0 0.0
        %1482 = vmatpush1.msra.mxu0 0.0
        %1483 = vmatprep.subr.mxu0 0.0
        %1484 = vmatpush1.msra.mxu0 0.0
        %1485 = vmatprep.subr.mxu0 0.0
        %1486 = vmatpush1.msra.mxu0 0.0
        %1487 = vmatprep.subr.mxu0 0.0
        %1488 = vmatpush1.msra.mxu0 0.0
        %1489 = vmatprep.subr.mxu0 0.0
        %1490 = vmatpush1.msra.mxu0 0.0
        %1491 = vmatprep.subr.mxu0 0.0
        %1492 = vmatpush1.msra.mxu0 0.0
        %1493 = vmatprep.subr.mxu0 0.0
        %1494 = vmatpush1.msra.mxu0 0.0
        %1495 = vmatprep.subr.mxu0 0.0
        %1496 = vmatpush1.msra.mxu0 0.0
        %1497 = vmatprep.subr.mxu0 0.0
        %1498 = vmatpush1.msra.mxu0 0.0
        %1499 = vmatprep.subr.mxu0 0.0
        %1500 = vmatpush1.msra.mxu0 0.0
        %1501 = vmatprep.subr.mxu0 0.0
        %1502 = vmatpush1.msra.mxu0 0.0
        %1503 = vmatprep.subr.mxu0 0.0
        %1504 = vmatpush1.msra.mxu0 0.0
        %1505 = vmatprep.subr.mxu0 0.0
        %1506 = vmatpush1.msra.mxu0 0.0
        %1507 = vmatprep.subr.mxu0 0.0
        %1508 = vmatpush1.msra.mxu0 0.0
        %1509 = vmatprep.subr.mxu0 0.0
        %1510 = vmatpush1.msra.mxu0 0.0
        %1511 = vmatprep.mubr.f32.mxu0 0.0
        %1512 = vmatmul.mubr.f32.gmra.mrb[0].mxu0 %v1442
        %v1513 = vpop.f32.mrb[0].mxu0
        %v1514 = vadd.f32 %v1434, %v1513
        %v1515 = vpop.f32.mrb[0].mxu0
        %1516 = vmatprep.mubr.f32.mxu0 0.0
        %1517 = vmatmul.mubr.f32.gmra.mrb[0].mxu0 %v1445
        %v1518 = vpop.f32.mrb[0].mxu0
        %v1519 = vadd.f32 %v1439, %v1518
        %v1520 = vpop.f32.mrb[0].mxu0
        %1521 = vdwg.mxu0
        %1522 = vst [vmem:[%s469] sm:$0xff] %v1514
        %1523 = vst [vmem:[%s469 + $0x8] sm:$0xff] %v1519
        %s1524 = sand.u32 %s318, 1
        %s1525 = scalar_lea.sflag [#allocation3], %s1524
        %s1526 = sand.u32 %s318, 1
        %s1527 = smul.addr %s1526, 8
        %s1528 = scalar_lea.vmem [#allocation2], %s1527
        %s1529 = sand.u32 %s344, 1
        %s1530 = scalar_lea.sflag [#allocation5], %s1529
        %s1531 = sand.u32 %s344, 1
        %s1532 = smul.addr %s1531, 16
        %s1533 = scalar_lea.vmem [#allocation4], %s1532
        // Predicated region
        $region73: #{tpu_custom_call.1} parent=71 // pred_check
          %p1534 = pneg %p328
        $region74: #{tpu_custom_call.1} parent=71 // pred_check_branch
          %1536 = sbr.rel (%p1534) target = $region76
        $region75: #{tpu_custom_call.1} parent=71 // pred_region
          %s1538 = ssub.s32 128, 128
          %1539 = vsyncadd %s1525, %s1538
          %s1540 = smul.addr %s32, 128
          %s1541 = scalar_lea.hbm %s13, %s1540
          %s1543 = sshll.u32 %s1528, 4
          %s1544 = int_to_ptr.vmem [resolvable:$true] %s1543
          %1546 = dma.vmem_to_hbm [thread:$0]  %s1544, 128, %s1541, %s1525
        $region76: #{tpu_custom_call.1} parent=71 // pred_fallthru
          _
        // Predicated region
        $region77: #{tpu_custom_call.1} parent=71 // pred_check
          %p1547 = pneg %p354
        $region78: #{tpu_custom_call.1} parent=71 // pred_check_branch
          %1549 = sbr.rel (%p1547) target = $region80
        $region79: #{tpu_custom_call.1} parent=71 // pred_region
          %s1551 = ssub.s32 256, 256
          %1552 = vsyncadd %s1530, %s1551
          %s1553 = smul.addr %s32, 2
          %s1554 = smul.addr %s1553, 128
          %s1555 = scalar_lea.hbm %s14, %s1554
          %s1556 = sshll.u32 %s1533, 4
          %s1557 = int_to_ptr.vmem [resolvable:$true] %s1556
          %1562 = dma.vmem_to_hbm [thread:$0]  %s1557, 256, %s1555, %s1530, 128, 128, 8
        $region80: #{tpu_custom_call.1} parent=71 // pred_fallthru
          _
      $region72: #{tpu_custom_call.1} parent=5 // pred_fallthru
        _
      %p1563 = scmp.le.s32.totalorder 2, %s27
      // Predicated region
      $region81: #{tpu_custom_call.1} parent=5 // pred_check
        %p1564 = pneg %p1563
      $region82: #{tpu_custom_call.1} parent=5 // pred_check_branch
        %1566 = sbr.rel (%p1564) target = $region84
      $region83: #{tpu_custom_call.1} parent=5 // pred_region
        %s1567 = ssub.s32 %s27, 2
        // Predicated region
        $region85: #{tpu_custom_call.1} parent=83 // pred_check
          %p1568 = pneg %p334
        $region86: #{tpu_custom_call.1} parent=83 // pred_check_branch
          %1570 = sbr.rel (%p1568) target = $region88
        $region87: #{tpu_custom_call.1} parent=83 // pred_region
          %s1571 = sand.u32 %s319, 1
          %s1572 = scalar_lea.sflag [#allocation3], %s1571
          %s1573 = sand.u32 %s319, 1
          %s1574 = smul.addr %s1573, 8
          %s1575 = scalar_lea.vmem [#allocation2], %s1574
          %1576 = dma.done %s1572, 128
        $region88: #{tpu_custom_call.1} parent=83 // pred_fallthru
          _
        // Predicated region
        $region89: #{tpu_custom_call.1} parent=83 // pred_check
          %p1577 = pneg %p360
        $region90: #{tpu_custom_call.1} parent=83 // pred_check_branch
          %1579 = sbr.rel (%p1577) target = $region92
        $region91: #{tpu_custom_call.1} parent=83 // pred_region
          %s1580 = sand.u32 %s345, 1
          %s1581 = scalar_lea.sflag [#allocation5], %s1580
          %s1582 = sand.u32 %s345, 1
          %s1583 = smul.addr %s1582, 16
          %s1584 = scalar_lea.vmem [#allocation4], %s1583
          %1585 = dma.done %s1581, 256
        $region92: #{tpu_custom_call.1} parent=83 // pred_fallthru
          _
      $region84: #{tpu_custom_call.1} parent=5 // pred_fallthru
        _
    $region6: #{tpu_custom_call.1} parent=1 // loop_footer
      %s31 = sadd.s32 1, %s27
    $region7: #{tpu_custom_call.1} parent=1 // loop_footer_branch
      %26 = sbr.rel target = $region3
    $region8: #{tpu_custom_call.1} parent=1 // loop_exit
      _
    %1586 = vsyncpa [#allocation3], 1
    %s1587 = scalar_lea.sflag [#allocation3], 1
    %1588 = vsyncpa %s1587, 1
    %1589 = vsyncpa [#allocation5], 1
    %s1590 = scalar_lea.sflag [#allocation5], 1
    %1591 = vsyncpa %s1590, 1

</llo_original>
